<compile_context>
chip_gen: v6e
topology: v6e:2x2x1
jax: 0.10.0
libtpu: 0.0.40
codegen_flags: <defaults>
</compile_context>

<pallas_src>
import functools

import numpy as np
import jax
import jax.numpy as jnp
from jax.experimental import pallas as pl
from jax.experimental.pallas import tpu as pltpu


# Static network geometry (Conv 3x3 stride 2, no padding, 28x28 input).
C1, C2, C3, FC1 = 32, 64, 128, 512
H2_USED = W2_USED = 5        # conv2 positions actually consumed by conv3 (row/col 5 of the
                             # 6x6 conv2 map never reaches conv3, so it is never computed)
N_POS2 = H2_USED * W2_USED   # 25
H3_OUT = W3_OUT = 2          # conv3 output spatial
N_POS3 = H3_OUT * W3_OUT     # 4
PATCH = 7 * 7                # 7x7 input patch feeding one conv2 output position
K1E = 9 * C1                 # 288: conv1-within-patch output width (9 window pos x 32 ch)
K3 = 9 * C2                  # 576: conv3 im2col contraction depth
KPAD = 128                   # fc2 logits padded to a full lane width
TB_MAX = 256                 # batch tile (v7x-safe; raise to 512 on v5e/v6e)


def _round_up(x, m):
    return (x + m - 1) // m * m


# ----------------------------------------------------------------------------
# Single fused kernel: conv1 + conv2 + conv3 + flatten + fc1 + ReLU + fc2
#   col:  (25, tb, 49)  bf16   7x7 input patch per used conv2 position
#   w1e:  (49, 288) bf16  block-sparse expanded conv1 weights, b1e: (1, 288) f32
#   w2:   (288, 64) bf16, b2: (1, 64) f32
#   w3:   (576, 128) bf16, b3: (1, 128) f32
#   wf1:  (512, 512) bf16  (NCHW flatten absorbed), bf1: (1, 512) f32
#   wf2:  (512, 128) bf16  (out lanes zero-padded), bf2: (1, 128) f32
#   out:  (tb, 128) f32   -> wrapper slices [:, :k]
# ----------------------------------------------------------------------------
def _cnn_kernel(col_ref, w1_ref, b1_ref, w2_ref, b2_ref, w3_ref, b3_ref,
                wf1_ref, bf1_ref, wf2_ref, bf2_ref, o_ref):
    tb = col_ref.shape[1]

    # conv1 + conv2 as two M = 25*tb matmuls.  The (25, tb, 49) -> (25*tb, 49)
    # reshape is a tile-aligned leading-dim merge (tb is a multiple of 8).
    col = col_ref[...].reshape(N_POS2 * tb, PATCH)
    a1 = jnp.dot(col, w1_ref[...], preferred_element_type=jnp.float32)
    a1 = jnp.maximum(a1 + b1_ref[...], 0.0).astype(jnp.bfloat16)        # (25*tb, 288)
    a2 = jnp.dot(a1, w2_ref[...], preferred_element_type=jnp.float32)
    a2 = jnp.maximum(a2 + b2_ref[...], 0.0).astype(jnp.bfloat16)        # (25*tb, 64)
    a2 = a2.reshape(N_POS2, tb, C2)                                     # leading-dim split

    # conv3 as ONE im2col matmul (M = 4*tb, K = 576): gather the 9 VMEM-resident
    # conv2 taps of each conv3 position by lane concatenation.
    cols3 = []
    for oh3 in range(H3_OUT):
        for ow3 in range(W3_OUT):
            taps = [a2[(2 * oh3 + ki) * W2_USED + (2 * ow3 + kj)]
                    for ki in range(3) for kj in range(3)]
            cols3.append(jnp.concatenate(taps, axis=-1))                # (tb, 576)
    col3 = jnp.concatenate(cols3, axis=0)                               # (4*tb, 576)
    a3 = jnp.dot(col3, w3_ref[...], preferred_element_type=jnp.float32)
    a3 = jnp.maximum(a3 + b3_ref[...], 0.0).astype(jnp.bfloat16)        # (4*tb, 128)
    a3 = a3.reshape(N_POS3, tb, C3)

    # flatten (permutation absorbed into wf1) + fc1 as ONE K=512 matmul + ReLU.
    feat = jnp.concatenate([a3[p] for p in range(N_POS3)], axis=-1)     # (tb, 512) bf16
    h = jnp.dot(feat, wf1_ref[...], preferred_element_type=jnp.float32)
    h = jnp.maximum(h + bf1_ref[...], 0.0).astype(jnp.bfloat16)         # (tb, 512)

    # fc2 into lane-dense padded f32 logits.
    o_ref[...] = jnp.dot(h, wf2_ref[...], preferred_element_type=jnp.float32) + bf2_ref[...]


def cnn_fused_call(col, params, *, tb):
    n_pad = col.shape[1]
    weights = [params[k] for k in ("w1e", "b1e", "w2", "b2", "w3", "b3",
                                   "wf1", "bf1", "wf2", "bf2")]
    flops = 2 * n_pad * (N_POS2 * PATCH * K1E + N_POS2 * K1E * C2
                         + N_POS3 * K3 * C3 + FC1 * FC1 + FC1 * KPAD)
    bytes_accessed = (col.size * col.dtype.itemsize + n_pad * KPAD * 4
                      + sum(w.size * w.dtype.itemsize for w in weights))
    return pl.pallas_call(
        _cnn_kernel,
        out_shape=jax.ShapeDtypeStruct((n_pad, KPAD), jnp.float32),
        grid=(n_pad // tb,),
        in_specs=[pl.BlockSpec((N_POS2, tb, PATCH), lambda i: (0, i, 0))]
                 + [pl.BlockSpec(w.shape, lambda i: (0, 0)) for w in weights],
        out_specs=pl.BlockSpec((tb, KPAD), lambda i: (i, 0)),
        compiler_params=pltpu.CompilerParams(
            dimension_semantics=("parallel",),
            vmem_limit_bytes=48 << 20,
        ),
        cost_estimate=pl.CostEstimate(flops=int(flops), transcendentals=0,
                                      bytes_accessed=int(bytes_accessed)),
    )(col, *weights)


# ----------------------------------------------------------------------------
# Parameter init: PyTorch-default-style (Kaiming-uniform) weights/biases, then
# pre-reshape / pre-transpose / bf16-cast ONCE so the forward does no layout work.
# ----------------------------------------------------------------------------
def init_params(key, k_classes):
    keys = jax.random.split(key, 10)

    def u(k, shape, fan_in):
        bound = 1.0 / np.sqrt(fan_in)
        return jax.random.uniform(k, shape, jnp.float32, -bound, bound)

    conv1_w, conv1_b = u(keys[0], (C1, 1, 3, 3), 9),          u(keys[1], (C1,), 9)
    conv2_w, conv2_b = u(keys[2], (C2, C1, 3, 3), C1 * 9),    u(keys[3], (C2,), C1 * 9)
    conv3_w, conv3_b = u(keys[4], (C3, C2, 3, 3), C2 * 9),    u(keys[5], (C3,), C2 * 9)
    fc1_w, fc1_b = u(keys[6], (FC1, C3 * N_POS3), C3 * N_POS3), u(keys[7], (FC1,), C3 * N_POS3)
    fc2_w, fc2_b = u(keys[8], (k_classes, FC1), FC1),           u(keys[9], (k_classes,), FC1)

    # conv1 expanded over the 7x7 patch:
    #   w1e[(2*ki+di)*7 + (2*kj+dj), (ki*3+kj)*32 + co] = conv1_w[co, 0, di, dj]
    # so one matmul computes all 9 conv1 activations of a conv2 window with the
    # output columns already in conv2's (window-pos-major, channel-minor) K order.
    w1np = np.asarray(conv1_w)
    w1e = np.zeros((PATCH, K1E), np.float32)
    for ki in range(3):
        for kj in range(3):
            q0 = (ki * 3 + kj) * C1
            for di in range(3):
                for dj in range(3):
                    e = (2 * ki + di) * 7 + (2 * kj + dj)
                    w1e[e, q0:q0 + C1] = w1np[:, 0, di, dj]
    b1e = jnp.tile(conv1_b, 9).reshape(1, K1E)          # conv1 bias, one copy per window position

    # conv2/conv3: (Cout,Cin,3,3) -> (kh,kw,Cin,Cout) flattened to match im2col K order.
    w2 = conv2_w.transpose(2, 3, 1, 0).reshape(9 * C1, C2).astype(jnp.bfloat16)
    w3 = conv3_w.transpose(2, 3, 1, 0).reshape(9 * C2, C3).astype(jnp.bfloat16)

    # fc1: absorb the PyTorch NCHW flatten (in-index = c*4 + p3) so the kernel's
    # position-major concat (column = p3*128 + c) needs no transpose.
    wf1 = fc1_w.reshape(FC1, C3, N_POS3).transpose(2, 1, 0).reshape(C3 * N_POS3, FC1)
    wf1 = wf1.astype(jnp.bfloat16)

    # fc2: (k, 512) -> (512, k) zero-padded to 128 output lanes (lane-dense store).
    wf2 = jnp.pad(fc2_w.T, ((0, 0), (0, KPAD - k_classes))).astype(jnp.bfloat16)
    bf2 = jnp.pad(fc2_b, (0, KPAD - k_classes))

    return {
        "w1e": jnp.asarray(w1e, jnp.bfloat16), "b1e": b1e,
        "w2": w2, "b2": conv2_b.reshape(1, C2),
        "w3": w3, "b3": conv3_b.reshape(1, C3),
        "wf1": wf1, "bf1": fc1_b.reshape(1, FC1),
        "wf2": wf2, "bf2": bf2.reshape(1, KPAD),
    }


# ----------------------------------------------------------------------------
# Forward pass (mirrors CNN.forward, eval mode)
# ----------------------------------------------------------------------------
@functools.partial(jax.jit, static_argnames=("k_classes",))
def cnn_forward(params, x, k_classes):
    assert x.shape[1:] == (1, 28, 28), x.shape   # flattened conv output must be 128*2*2
    n = x.shape[0]
    tb = min(TB_MAX, _round_up(n, 8))
    n_pad = _round_up(n, tb)

    xs = x.reshape(n, 28, 28)
    if n_pad != n:
        xs = jnp.pad(xs, ((0, n_pad - n), (0, 0), (0, 0)))

    # One 7x7 / stride-4 input patch per used conv2 output position: (25, n_pad, 49)
    # position-major.  Pure XLA gather glue on the raw input; the only HBM
    # intermediate of the whole forward pass (~3.4 KB/sample in bf16).
    patches = [xs[:, 4 * oh:4 * oh + 7, 4 * ow:4 * ow + 7].reshape(n_pad, PATCH)
               for oh in range(H2_USED) for ow in range(W2_USED)]
    col = jnp.stack(patches, axis=0).astype(jnp.bfloat16)

    # TODO(synk): Dropout(0.2) layers are identity (eval-mode); training-mode RNG
    # masking is not implemented.
    logits = cnn_fused_call(col, params, tb=tb)
    return logits[:n, :k_classes]


if __name__ == "__main__":
    k_classes = 10
    key = jax.random.PRNGKey(0)
    pkey, xkey = jax.random.split(key)

    params = init_params(pkey, k_classes)
    # Input spatial size must be 28x28 (as implied by Linear(128*2*2, 512)).
    x = jax.random.normal(xkey, (2, 1, 28, 28), jnp.float32)

    out = cnn_forward(params, x, k_classes=k_classes)
    out = jax.block_until_ready(out)
    assert out.shape == (2, k_classes), out.shape
    print("KERNEL_OK")
</pallas_src>

<mosaic_0001>
module attributes {stable_mosaic.version = 11 : i64} {
  func.func @_cnn_kernel(%arg0: i32, %arg1: memref<25x8x49xbf16, #tpu.memory_space<vmem>>, %arg2: memref<49x288xbf16, #tpu.memory_space<vmem>>, %arg3: memref<1x288xf32, #tpu.memory_space<vmem>>, %arg4: memref<288x64xbf16, #tpu.memory_space<vmem>>, %arg5: memref<1x64xf32, #tpu.memory_space<vmem>>, %arg6: memref<576x128xbf16, #tpu.memory_space<vmem>>, %arg7: memref<1x128xf32, #tpu.memory_space<vmem>>, %arg8: memref<512x512xbf16, #tpu.memory_space<vmem>>, %arg9: memref<1x512xf32, #tpu.memory_space<vmem>>, %arg10: memref<512x128xbf16, #tpu.memory_space<vmem>>, %arg11: memref<1x128xf32, #tpu.memory_space<vmem>>, %arg12: memref<8x128xf32, #tpu.memory_space<vmem>>) attributes {dimension_semantics = [#tpu.dimension_semantics<parallel>], iteration_bounds = array<i64: 1>, scalar_prefetch = 0 : i64, scratch_operands = 0 : i64, tpu.core_type = #tpu.core_type<tc>, window_params = [{transform_indices = @transform_0, window_bounds = array<i64: 25, 8, 49>}, {pipeline_mode = #tpu.pipeline_mode<synchronous>, transform_indices = @transform_1, window_bounds = array<i64: 49, 288>}, {pipeline_mode = #tpu.pipeline_mode<synchronous>, transform_indices = @transform_2, window_bounds = array<i64: 1, 288>}, {pipeline_mode = #tpu.pipeline_mode<synchronous>, transform_indices = @transform_3, window_bounds = array<i64: 288, 64>}, {pipeline_mode = #tpu.pipeline_mode<synchronous>, transform_indices = @transform_4, window_bounds = array<i64: 1, 64>}, {pipeline_mode = #tpu.pipeline_mode<synchronous>, transform_indices = @transform_5, window_bounds = array<i64: 576, 128>}, {pipeline_mode = #tpu.pipeline_mode<synchronous>, transform_indices = @transform_6, window_bounds = array<i64: 1, 128>}, {pipeline_mode = #tpu.pipeline_mode<synchronous>, transform_indices = @transform_7, window_bounds = array<i64: 512, 512>}, {pipeline_mode = #tpu.pipeline_mode<synchronous>, transform_indices = @transform_8, window_bounds = array<i64: 1, 512>}, {pipeline_mode = #tpu.pipeline_mode<synchronous>, transform_indices = @transform_9, window_bounds = array<i64: 512, 128>}, {pipeline_mode = #tpu.pipeline_mode<synchronous>, transform_indices = @transform_10, window_bounds = array<i64: 1, 128>}, {transform_indices = @transform_11, window_bounds = array<i64: 8, 128>}]} {
    %c0 = arith.constant 0 : index
    %c0_0 = arith.constant 0 : index
    %c0_1 = arith.constant 0 : index
    %0 = vector.load %arg1[%c0, %c0_0, %c0_1] : memref<25x8x49xbf16, #tpu.memory_space<vmem>>, vector<25x8x49xbf16>
    %1 = vector.shape_cast %0 : vector<25x8x49xbf16> to vector<200x49xbf16>
    %c0_2 = arith.constant 0 : index
    %c0_3 = arith.constant 0 : index
    %2 = vector.load %arg2[%c0_2, %c0_3] : memref<49x288xbf16, #tpu.memory_space<vmem>>, vector<49x288xbf16>
    %cst = arith.constant dense<0.000000e+00> : vector<200x288xf32>
    %3 = tpu.matmul %1, %2, %cst {dimension_numbers = #tpu.dot_dimension_numbers<[1], [0], [0], [1], [0, 0, 1, 1], [], []>} : vector<200x49xbf16>, vector<49x288xbf16>, vector<200x288xf32> -> vector<200x288xf32>
    %c0_4 = arith.constant 0 : index
    %c0_5 = arith.constant 0 : index
    %4 = vector.load %arg3[%c0_4, %c0_5] : memref<1x288xf32, #tpu.memory_space<vmem>>, vector<1x288xf32>
    %5 = vector.broadcast %4 : vector<1x288xf32> to vector<200x288xf32>
    %6 = arith.addf %3, %5 : vector<200x288xf32>
    %cst_6 = arith.constant 0.000000e+00 : f32
    %7 = vector.broadcast %cst_6 : f32 to vector<200x288xf32>
    %8 = arith.maximumf %6, %7 : vector<200x288xf32>
    %9 = arith.truncf %8 : vector<200x288xf32> to vector<200x288xbf16>
    %c0_7 = arith.constant 0 : index
    %c0_8 = arith.constant 0 : index
    %10 = vector.load %arg4[%c0_7, %c0_8] : memref<288x64xbf16, #tpu.memory_space<vmem>>, vector<288x64xbf16>
    %cst_9 = arith.constant dense<0.000000e+00> : vector<200x64xf32>
    %11 = tpu.matmul %9, %10, %cst_9 {dimension_numbers = #tpu.dot_dimension_numbers<[1], [0], [0], [1], [0, 0, 1, 1], [], []>} : vector<200x288xbf16>, vector<288x64xbf16>, vector<200x64xf32> -> vector<200x64xf32>
    %c0_10 = arith.constant 0 : index
    %c0_11 = arith.constant 0 : index
    %12 = vector.load %arg5[%c0_10, %c0_11] : memref<1x64xf32, #tpu.memory_space<vmem>>, vector<1x64xf32>
    %13 = vector.broadcast %12 : vector<1x64xf32> to vector<200x64xf32>
    %14 = arith.addf %11, %13 : vector<200x64xf32>
    %cst_12 = arith.constant 0.000000e+00 : f32
    %15 = vector.broadcast %cst_12 : f32 to vector<200x64xf32>
    %16 = arith.maximumf %14, %15 : vector<200x64xf32>
    %17 = arith.truncf %16 : vector<200x64xf32> to vector<200x64xbf16>
    %18 = vector.shape_cast %17 : vector<200x64xbf16> to vector<25x8x64xbf16>
    %19 = vector.extract_strided_slice %18 {offsets = [0, 0, 0], sizes = [1, 8, 64], strides = [1, 1, 1]} : vector<25x8x64xbf16> to vector<1x8x64xbf16>
    %20 = vector.shape_cast %19 : vector<1x8x64xbf16> to vector<8x64xbf16>
    %21 = vector.extract_strided_slice %18 {offsets = [1, 0, 0], sizes = [1, 8, 64], strides = [1, 1, 1]} : vector<25x8x64xbf16> to vector<1x8x64xbf16>
    %22 = vector.shape_cast %21 : vector<1x8x64xbf16> to vector<8x64xbf16>
    %23 = vector.extract_strided_slice %18 {offsets = [2, 0, 0], sizes = [1, 8, 64], strides = [1, 1, 1]} : vector<25x8x64xbf16> to vector<1x8x64xbf16>
    %24 = vector.shape_cast %23 : vector<1x8x64xbf16> to vector<8x64xbf16>
    %25 = vector.extract_strided_slice %18 {offsets = [5, 0, 0], sizes = [1, 8, 64], strides = [1, 1, 1]} : vector<25x8x64xbf16> to vector<1x8x64xbf16>
    %26 = vector.shape_cast %25 : vector<1x8x64xbf16> to vector<8x64xbf16>
    %27 = vector.extract_strided_slice %18 {offsets = [6, 0, 0], sizes = [1, 8, 64], strides = [1, 1, 1]} : vector<25x8x64xbf16> to vector<1x8x64xbf16>
    %28 = vector.shape_cast %27 : vector<1x8x64xbf16> to vector<8x64xbf16>
    %29 = vector.extract_strided_slice %18 {offsets = [7, 0, 0], sizes = [1, 8, 64], strides = [1, 1, 1]} : vector<25x8x64xbf16> to vector<1x8x64xbf16>
    %30 = vector.shape_cast %29 : vector<1x8x64xbf16> to vector<8x64xbf16>
    %31 = vector.extract_strided_slice %18 {offsets = [10, 0, 0], sizes = [1, 8, 64], strides = [1, 1, 1]} : vector<25x8x64xbf16> to vector<1x8x64xbf16>
    %32 = vector.shape_cast %31 : vector<1x8x64xbf16> to vector<8x64xbf16>
    %33 = vector.extract_strided_slice %18 {offsets = [11, 0, 0], sizes = [1, 8, 64], strides = [1, 1, 1]} : vector<25x8x64xbf16> to vector<1x8x64xbf16>
    %34 = vector.shape_cast %33 : vector<1x8x64xbf16> to vector<8x64xbf16>
    %35 = vector.extract_strided_slice %18 {offsets = [12, 0, 0], sizes = [1, 8, 64], strides = [1, 1, 1]} : vector<25x8x64xbf16> to vector<1x8x64xbf16>
    %36 = vector.shape_cast %35 : vector<1x8x64xbf16> to vector<8x64xbf16>
    %37 = tpu.concatenate %20, %22, %24, %26, %28, %30, %32, %34, %36 in 1 : vector<8x64xbf16>, vector<8x64xbf16>, vector<8x64xbf16>, vector<8x64xbf16>, vector<8x64xbf16>, vector<8x64xbf16>, vector<8x64xbf16>, vector<8x64xbf16>, vector<8x64xbf16> -> vector<8x576xbf16>
    %38 = vector.extract_strided_slice %18 {offsets = [2, 0, 0], sizes = [1, 8, 64], strides = [1, 1, 1]} : vector<25x8x64xbf16> to vector<1x8x64xbf16>
    %39 = vector.shape_cast %38 : vector<1x8x64xbf16> to vector<8x64xbf16>
    %40 = vector.extract_strided_slice %18 {offsets = [3, 0, 0], sizes = [1, 8, 64], strides = [1, 1, 1]} : vector<25x8x64xbf16> to vector<1x8x64xbf16>
    %41 = vector.shape_cast %40 : vector<1x8x64xbf16> to vector<8x64xbf16>
    %42 = vector.extract_strided_slice %18 {offsets = [4, 0, 0], sizes = [1, 8, 64], strides = [1, 1, 1]} : vector<25x8x64xbf16> to vector<1x8x64xbf16>
    %43 = vector.shape_cast %42 : vector<1x8x64xbf16> to vector<8x64xbf16>
    %44 = vector.extract_strided_slice %18 {offsets = [7, 0, 0], sizes = [1, 8, 64], strides = [1, 1, 1]} : vector<25x8x64xbf16> to vector<1x8x64xbf16>
    %45 = vector.shape_cast %44 : vector<1x8x64xbf16> to vector<8x64xbf16>
    %46 = vector.extract_strided_slice %18 {offsets = [8, 0, 0], sizes = [1, 8, 64], strides = [1, 1, 1]} : vector<25x8x64xbf16> to vector<1x8x64xbf16>
    %47 = vector.shape_cast %46 : vector<1x8x64xbf16> to vector<8x64xbf16>
    %48 = vector.extract_strided_slice %18 {offsets = [9, 0, 0], sizes = [1, 8, 64], strides = [1, 1, 1]} : vector<25x8x64xbf16> to vector<1x8x64xbf16>
    %49 = vector.shape_cast %48 : vector<1x8x64xbf16> to vector<8x64xbf16>
    %50 = vector.extract_strided_slice %18 {offsets = [12, 0, 0], sizes = [1, 8, 64], strides = [1, 1, 1]} : vector<25x8x64xbf16> to vector<1x8x64xbf16>
    %51 = vector.shape_cast %50 : vector<1x8x64xbf16> to vector<8x64xbf16>
    %52 = vector.extract_strided_slice %18 {offsets = [13, 0, 0], sizes = [1, 8, 64], strides = [1, 1, 1]} : vector<25x8x64xbf16> to vector<1x8x64xbf16>
    %53 = vector.shape_cast %52 : vector<1x8x64xbf16> to vector<8x64xbf16>
    %54 = vector.extract_strided_slice %18 {offsets = [14, 0, 0], sizes = [1, 8, 64], strides = [1, 1, 1]} : vector<25x8x64xbf16> to vector<1x8x64xbf16>
    %55 = vector.shape_cast %54 : vector<1x8x64xbf16> to vector<8x64xbf16>
    %56 = tpu.concatenate %39, %41, %43, %45, %47, %49, %51, %53, %55 in 1 : vector<8x64xbf16>, vector<8x64xbf16>, vector<8x64xbf16>, vector<8x64xbf16>, vector<8x64xbf16>, vector<8x64xbf16>, vector<8x64xbf16>, vector<8x64xbf16>, vector<8x64xbf16> -> vector<8x576xbf16>
    %57 = vector.extract_strided_slice %18 {offsets = [10, 0, 0], sizes = [1, 8, 64], strides = [1, 1, 1]} : vector<25x8x64xbf16> to vector<1x8x64xbf16>
    %58 = vector.shape_cast %57 : vector<1x8x64xbf16> to vector<8x64xbf16>
    %59 = vector.extract_strided_slice %18 {offsets = [11, 0, 0], sizes = [1, 8, 64], strides = [1, 1, 1]} : vector<25x8x64xbf16> to vector<1x8x64xbf16>
    %60 = vector.shape_cast %59 : vector<1x8x64xbf16> to vector<8x64xbf16>
    %61 = vector.extract_strided_slice %18 {offsets = [12, 0, 0], sizes = [1, 8, 64], strides = [1, 1, 1]} : vector<25x8x64xbf16> to vector<1x8x64xbf16>
    %62 = vector.shape_cast %61 : vector<1x8x64xbf16> to vector<8x64xbf16>
    %63 = vector.extract_strided_slice %18 {offsets = [15, 0, 0], sizes = [1, 8, 64], strides = [1, 1, 1]} : vector<25x8x64xbf16> to vector<1x8x64xbf16>
    %64 = vector.shape_cast %63 : vector<1x8x64xbf16> to vector<8x64xbf16>
    %65 = vector.extract_strided_slice %18 {offsets = [16, 0, 0], sizes = [1, 8, 64], strides = [1, 1, 1]} : vector<25x8x64xbf16> to vector<1x8x64xbf16>
    %66 = vector.shape_cast %65 : vector<1x8x64xbf16> to vector<8x64xbf16>
    %67 = vector.extract_strided_slice %18 {offsets = [17, 0, 0], sizes = [1, 8, 64], strides = [1, 1, 1]} : vector<25x8x64xbf16> to vector<1x8x64xbf16>
    %68 = vector.shape_cast %67 : vector<1x8x64xbf16> to vector<8x64xbf16>
    %69 = vector.extract_strided_slice %18 {offsets = [20, 0, 0], sizes = [1, 8, 64], strides = [1, 1, 1]} : vector<25x8x64xbf16> to vector<1x8x64xbf16>
    %70 = vector.shape_cast %69 : vector<1x8x64xbf16> to vector<8x64xbf16>
    %71 = vector.extract_strided_slice %18 {offsets = [21, 0, 0], sizes = [1, 8, 64], strides = [1, 1, 1]} : vector<25x8x64xbf16> to vector<1x8x64xbf16>
    %72 = vector.shape_cast %71 : vector<1x8x64xbf16> to vector<8x64xbf16>
    %73 = vector.extract_strided_slice %18 {offsets = [22, 0, 0], sizes = [1, 8, 64], strides = [1, 1, 1]} : vector<25x8x64xbf16> to vector<1x8x64xbf16>
    %74 = vector.shape_cast %73 : vector<1x8x64xbf16> to vector<8x64xbf16>
    %75 = tpu.concatenate %58, %60, %62, %64, %66, %68, %70, %72, %74 in 1 : vector<8x64xbf16>, vector<8x64xbf16>, vector<8x64xbf16>, vector<8x64xbf16>, vector<8x64xbf16>, vector<8x64xbf16>, vector<8x64xbf16>, vector<8x64xbf16>, vector<8x64xbf16> -> vector<8x576xbf16>
    %76 = vector.extract_strided_slice %18 {offsets = [12, 0, 0], sizes = [1, 8, 64], strides = [1, 1, 1]} : vector<25x8x64xbf16> to vector<1x8x64xbf16>
    %77 = vector.shape_cast %76 : vector<1x8x64xbf16> to vector<8x64xbf16>
    %78 = vector.extract_strided_slice %18 {offsets = [13, 0, 0], sizes = [1, 8, 64], strides = [1, 1, 1]} : vector<25x8x64xbf16> to vector<1x8x64xbf16>
    %79 = vector.shape_cast %78 : vector<1x8x64xbf16> to vector<8x64xbf16>
    %80 = vector.extract_strided_slice %18 {offsets = [14, 0, 0], sizes = [1, 8, 64], strides = [1, 1, 1]} : vector<25x8x64xbf16> to vector<1x8x64xbf16>
    %81 = vector.shape_cast %80 : vector<1x8x64xbf16> to vector<8x64xbf16>
    %82 = vector.extract_strided_slice %18 {offsets = [17, 0, 0], sizes = [1, 8, 64], strides = [1, 1, 1]} : vector<25x8x64xbf16> to vector<1x8x64xbf16>
    %83 = vector.shape_cast %82 : vector<1x8x64xbf16> to vector<8x64xbf16>
    %84 = vector.extract_strided_slice %18 {offsets = [18, 0, 0], sizes = [1, 8, 64], strides = [1, 1, 1]} : vector<25x8x64xbf16> to vector<1x8x64xbf16>
    %85 = vector.shape_cast %84 : vector<1x8x64xbf16> to vector<8x64xbf16>
    %86 = vector.extract_strided_slice %18 {offsets = [19, 0, 0], sizes = [1, 8, 64], strides = [1, 1, 1]} : vector<25x8x64xbf16> to vector<1x8x64xbf16>
    %87 = vector.shape_cast %86 : vector<1x8x64xbf16> to vector<8x64xbf16>
    %88 = vector.extract_strided_slice %18 {offsets = [22, 0, 0], sizes = [1, 8, 64], strides = [1, 1, 1]} : vector<25x8x64xbf16> to vector<1x8x64xbf16>
    %89 = vector.shape_cast %88 : vector<1x8x64xbf16> to vector<8x64xbf16>
    %90 = vector.extract_strided_slice %18 {offsets = [23, 0, 0], sizes = [1, 8, 64], strides = [1, 1, 1]} : vector<25x8x64xbf16> to vector<1x8x64xbf16>
    %91 = vector.shape_cast %90 : vector<1x8x64xbf16> to vector<8x64xbf16>
    %92 = vector.extract_strided_slice %18 {offsets = [24, 0, 0], sizes = [1, 8, 64], strides = [1, 1, 1]} : vector<25x8x64xbf16> to vector<1x8x64xbf16>
    %93 = vector.shape_cast %92 : vector<1x8x64xbf16> to vector<8x64xbf16>
    %94 = tpu.concatenate %77, %79, %81, %83, %85, %87, %89, %91, %93 in 1 : vector<8x64xbf16>, vector<8x64xbf16>, vector<8x64xbf16>, vector<8x64xbf16>, vector<8x64xbf16>, vector<8x64xbf16>, vector<8x64xbf16>, vector<8x64xbf16>, vector<8x64xbf16> -> vector<8x576xbf16>
    %95 = tpu.concatenate %37, %56, %75, %94 in 0 : vector<8x576xbf16>, vector<8x576xbf16>, vector<8x576xbf16>, vector<8x576xbf16> -> vector<32x576xbf16>
    %c0_13 = arith.constant 0 : index
    %c0_14 = arith.constant 0 : index
    %96 = vector.load %arg6[%c0_13, %c0_14] : memref<576x128xbf16, #tpu.memory_space<vmem>>, vector<576x128xbf16>
    %cst_15 = arith.constant dense<0.000000e+00> : vector<32x128xf32>
    %97 = tpu.matmul %95, %96, %cst_15 {dimension_numbers = #tpu.dot_dimension_numbers<[1], [0], [0], [1], [0, 0, 1, 1], [], []>} : vector<32x576xbf16>, vector<576x128xbf16>, vector<32x128xf32> -> vector<32x128xf32>
    %c0_16 = arith.constant 0 : index
    %c0_17 = arith.constant 0 : index
    %98 = vector.load %arg7[%c0_16, %c0_17] : memref<1x128xf32, #tpu.memory_space<vmem>>, vector<1x128xf32>
    %99 = vector.broadcast %98 : vector<1x128xf32> to vector<32x128xf32>
    %100 = arith.addf %97, %99 : vector<32x128xf32>
    %cst_18 = arith.constant 0.000000e+00 : f32
    %101 = vector.broadcast %cst_18 : f32 to vector<32x128xf32>
    %102 = arith.maximumf %100, %101 : vector<32x128xf32>
    %103 = arith.truncf %102 : vector<32x128xf32> to vector<32x128xbf16>
    %104 = vector.shape_cast %103 : vector<32x128xbf16> to vector<4x8x128xbf16>
    %105 = vector.extract_strided_slice %104 {offsets = [0, 0, 0], sizes = [1, 8, 128], strides = [1, 1, 1]} : vector<4x8x128xbf16> to vector<1x8x128xbf16>
    %106 = vector.shape_cast %105 : vector<1x8x128xbf16> to vector<8x128xbf16>
    %107 = vector.extract_strided_slice %104 {offsets = [1, 0, 0], sizes = [1, 8, 128], strides = [1, 1, 1]} : vector<4x8x128xbf16> to vector<1x8x128xbf16>
    %108 = vector.shape_cast %107 : vector<1x8x128xbf16> to vector<8x128xbf16>
    %109 = vector.extract_strided_slice %104 {offsets = [2, 0, 0], sizes = [1, 8, 128], strides = [1, 1, 1]} : vector<4x8x128xbf16> to vector<1x8x128xbf16>
    %110 = vector.shape_cast %109 : vector<1x8x128xbf16> to vector<8x128xbf16>
    %111 = vector.extract_strided_slice %104 {offsets = [3, 0, 0], sizes = [1, 8, 128], strides = [1, 1, 1]} : vector<4x8x128xbf16> to vector<1x8x128xbf16>
    %112 = vector.shape_cast %111 : vector<1x8x128xbf16> to vector<8x128xbf16>
    %113 = tpu.concatenate %106, %108, %110, %112 in 1 : vector<8x128xbf16>, vector<8x128xbf16>, vector<8x128xbf16>, vector<8x128xbf16> -> vector<8x512xbf16>
    %c0_19 = arith.constant 0 : index
    %c0_20 = arith.constant 0 : index
    %114 = vector.load %arg8[%c0_19, %c0_20] : memref<512x512xbf16, #tpu.memory_space<vmem>>, vector<512x512xbf16>
    %cst_21 = arith.constant dense<0.000000e+00> : vector<8x512xf32>
    %115 = tpu.matmul %113, %114, %cst_21 {dimension_numbers = #tpu.dot_dimension_numbers<[1], [0], [0], [1], [0, 0, 1, 1], [], []>} : vector<8x512xbf16>, vector<512x512xbf16>, vector<8x512xf32> -> vector<8x512xf32>
    %c0_22 = arith.constant 0 : index
    %c0_23 = arith.constant 0 : index
    %116 = vector.load %arg9[%c0_22, %c0_23] : memref<1x512xf32, #tpu.memory_space<vmem>>, vector<1x512xf32>
    %117 = vector.broadcast %116 : vector<1x512xf32> to vector<8x512xf32>
    %118 = arith.addf %115, %117 : vector<8x512xf32>
    %cst_24 = arith.constant 0.000000e+00 : f32
    %119 = vector.broadcast %cst_24 : f32 to vector<8x512xf32>
    %120 = arith.maximumf %118, %119 : vector<8x512xf32>
    %121 = arith.truncf %120 : vector<8x512xf32> to vector<8x512xbf16>
    %c0_25 = arith.constant 0 : index
    %c0_26 = arith.constant 0 : index
    %122 = vector.load %arg10[%c0_25, %c0_26] : memref<512x128xbf16, #tpu.memory_space<vmem>>, vector<512x128xbf16>
    %cst_27 = arith.constant dense<0.000000e+00> : vector<8x128xf32>
    %123 = tpu.matmul %121, %122, %cst_27 {dimension_numbers = #tpu.dot_dimension_numbers<[1], [0], [0], [1], [0, 0, 1, 1], [], []>} : vector<8x512xbf16>, vector<512x128xbf16>, vector<8x128xf32> -> vector<8x128xf32>
    %c0_28 = arith.constant 0 : index
    %c0_29 = arith.constant 0 : index
    %124 = vector.load %arg11[%c0_28, %c0_29] : memref<1x128xf32, #tpu.memory_space<vmem>>, vector<1x128xf32>
    %125 = vector.broadcast %124 : vector<1x128xf32> to vector<8x128xf32>
    %126 = arith.addf %123, %125 : vector<8x128xf32>
    %c0_30 = arith.constant 0 : index
    %c0_31 = arith.constant 0 : index
    %127 = vector.load %arg12[%c0_30, %c0_31] : memref<8x128xf32, #tpu.memory_space<vmem>>, vector<8x128xf32>
    tpu.vector_store %arg12[%c0_30, %c0_31], %126 {strides = array<i32>} : memref<8x128xf32, #tpu.memory_space<vmem>>, vector<8x128xf32>,
    return
  }
  func.func @transform_0(%arg0: i32) -> (i32, i32, i32) {
    %c0_i32 = arith.constant 0 : i32
    %c0_i32_0 = arith.constant 0 : i32
    %c0_i32_1 = arith.constant 0 : i32
    return %c0_i32, %arg0, %c0_i32_0 : i32, i32, i32
  }
  func.func @transform_1(%arg0: i32) -> (i32, i32) {
    %c0_i32 = arith.constant 0 : i32
    %c0_i32_0 = arith.constant 0 : i32
    %c0_i32_1 = arith.constant 0 : i32
    return %c0_i32, %c0_i32_0 : i32, i32
  }
  func.func @transform_2(%arg0: i32) -> (i32, i32) {
    %c0_i32 = arith.constant 0 : i32
    %c0_i32_0 = arith.constant 0 : i32
    %c0_i32_1 = arith.constant 0 : i32
    return %c0_i32, %c0_i32_0 : i32, i32
  }
  func.func @transform_3(%arg0: i32) -> (i32, i32) {
    %c0_i32 = arith.constant 0 : i32
    %c0_i32_0 = arith.constant 0 : i32
    %c0_i32_1 = arith.constant 0 : i32
    return %c0_i32, %c0_i32_0 : i32, i32
  }
  func.func @transform_4(%arg0: i32) -> (i32, i32) {
    %c0_i32 = arith.constant 0 : i32
    %c0_i32_0 = arith.constant 0 : i32
    %c0_i32_1 = arith.constant 0 : i32
    return %c0_i32, %c0_i32_0 : i32, i32
  }
  func.func @transform_5(%arg0: i32) -> (i32, i32) {
    %c0_i32 = arith.constant 0 : i32
    %c0_i32_0 = arith.constant 0 : i32
    %c0_i32_1 = arith.constant 0 : i32
    return %c0_i32, %c0_i32_0 : i32, i32
  }
  func.func @transform_6(%arg0: i32) -> (i32, i32) {
    %c0_i32 = arith.constant 0 : i32
    %c0_i32_0 = arith.constant 0 : i32
    %c0_i32_1 = arith.constant 0 : i32
    return %c0_i32, %c0_i32_0 : i32, i32
  }
  func.func @transform_7(%arg0: i32) -> (i32, i32) {
    %c0_i32 = arith.constant 0 : i32
    %c0_i32_0 = arith.constant 0 : i32
    %c0_i32_1 = arith.constant 0 : i32
    return %c0_i32, %c0_i32_0 : i32, i32
  }
  func.func @transform_8(%arg0: i32) -> (i32, i32) {
    %c0_i32 = arith.constant 0 : i32
    %c0_i32_0 = arith.constant 0 : i32
    %c0_i32_1 = arith.constant 0 : i32
    return %c0_i32, %c0_i32_0 : i32, i32
  }
  func.func @transform_9(%arg0: i32) -> (i32, i32) {
    %c0_i32 = arith.constant 0 : i32
    %c0_i32_0 = arith.constant 0 : i32
    %c0_i32_1 = arith.constant 0 : i32
    return %c0_i32, %c0_i32_0 : i32, i32
  }
  func.func @transform_10(%arg0: i32) -> (i32, i32) {
    %c0_i32 = arith.constant 0 : i32
    %c0_i32_0 = arith.constant 0 : i32
    %c0_i32_1 = arith.constant 0 : i32
    return %c0_i32, %c0_i32_0 : i32, i32
  }
  func.func @transform_11(%arg0: i32) -> (i32, i32) {
    %c0_i32 = arith.constant 0 : i32
    %c0_i32_0 = arith.constant 0 : i32
    return %arg0, %c0_i32 : i32, i32
  }
}

</mosaic_0001>

<llo_original>
// kernel: cnn_forward.1
$region0: #{cnn_forward.1}
  #allocation0 [shape = 'u32[]', space=smem, size = 0x4, offset = 0x4, fixed_abs, tag = 'smem constant byte address 0x4 - core index']
  #allocation1 [shape = 'u32[144,128]{1,0:T(1,128)}', space=vmem, size = 0x12000, scoped, tag = 'internal scratch']
  %s0 = inlined_call_operand.vmem [shape: bf16[25,8,49], index: 0, kind: input, shape index: {}]
  %s1 = inlined_call_operand.vmem [shape: bf16[49,288], index: 1, kind: input, shape index: {}]
  %s2 = inlined_call_operand.vmem [shape: f32[1,288], index: 2, kind: input, shape index: {}]
  %s3 = inlined_call_operand.vmem [shape: bf16[288,64], index: 3, kind: input, shape index: {}]
  %s4 = inlined_call_operand.vmem [shape: f32[1,64], index: 4, kind: input, shape index: {}]
  %s5 = inlined_call_operand.vmem [shape: bf16[576,128], index: 5, kind: input, shape index: {}]
  %s6 = inlined_call_operand.vmem [shape: f32[1,128], index: 6, kind: input, shape index: {}]
  %s7 = inlined_call_operand.vmem [shape: bf16[512,512], index: 7, kind: input, shape index: {}]
  %s8 = inlined_call_operand.vmem [shape: f32[1,512], index: 8, kind: input, shape index: {}]
  %s9 = inlined_call_operand.vmem [shape: bf16[512,128], index: 9, kind: input, shape index: {}]
  %s10 = inlined_call_operand.vmem [shape: f32[1,128], index: 10, kind: input, shape index: {}]
  %s11 = inlined_call_operand.vmem [shape: f32[8,128], index: 11, kind: output, shape index: {}]
  %s12 = sld [smem:[#allocation0]]
  $region54: #{cnn_forward.1} parent=0
    _
  %s14 = ssub.s32 1, %s12
  %s15 = scalar_select 0, %s14, %s12
  // Predicated region
  $region2: #{cnn_forward.1} parent=0 // pred_check
    _
  $region3: #{cnn_forward.1} parent=0 // pred_check_branch
    %17 = sbr.rel (0) target = $region5
  $region4: #{cnn_forward.1} parent=0 // pred_region
    _
  $region5: #{cnn_forward.1} parent=0 // pred_fallthru
    _
  // Predicated region
  $region6: #{cnn_forward.1} parent=0 // pred_check
    _
  $region7: #{cnn_forward.1} parent=0 // pred_check_branch
    %19 = sbr.rel (0) target = $region9
  $region8: #{cnn_forward.1} parent=0 // pred_region
    _
  $region9: #{cnn_forward.1} parent=0 // pred_fallthru
    _
  // Predicated region
  $region10: #{cnn_forward.1} parent=0 // pred_check
    _
  $region11: #{cnn_forward.1} parent=0 // pred_check_branch
    %21 = sbr.rel (0) target = $region13
  $region12: #{cnn_forward.1} parent=0 // pred_region
    _
  $region13: #{cnn_forward.1} parent=0 // pred_fallthru
    _
  // Predicated region
  $region14: #{cnn_forward.1} parent=0 // pred_check
    _
  $region15: #{cnn_forward.1} parent=0 // pred_check_branch
    %23 = sbr.rel (0) target = $region17
  $region16: #{cnn_forward.1} parent=0 // pred_region
    _
  $region17: #{cnn_forward.1} parent=0 // pred_fallthru
    _
  // Predicated region
  $region18: #{cnn_forward.1} parent=0 // pred_check
    _
  $region19: #{cnn_forward.1} parent=0 // pred_check_branch
    %25 = sbr.rel (0) target = $region21
  $region20: #{cnn_forward.1} parent=0 // pred_region
    _
  $region21: #{cnn_forward.1} parent=0 // pred_fallthru
    _
  // Predicated region
  $region22: #{cnn_forward.1} parent=0 // pred_check
    _
  $region23: #{cnn_forward.1} parent=0 // pred_check_branch
    %27 = sbr.rel (0) target = $region25
  $region24: #{cnn_forward.1} parent=0 // pred_region
    _
  $region25: #{cnn_forward.1} parent=0 // pred_fallthru
    _
  // Predicated region
  $region26: #{cnn_forward.1} parent=0 // pred_check
    _
  $region27: #{cnn_forward.1} parent=0 // pred_check_branch
    %29 = sbr.rel (0) target = $region29
  $region28: #{cnn_forward.1} parent=0 // pred_region
    _
  $region29: #{cnn_forward.1} parent=0 // pred_fallthru
    _
  // Predicated region
  $region30: #{cnn_forward.1} parent=0 // pred_check
    _
  $region31: #{cnn_forward.1} parent=0 // pred_check_branch
    %31 = sbr.rel (0) target = $region33
  $region32: #{cnn_forward.1} parent=0 // pred_region
    _
  $region33: #{cnn_forward.1} parent=0 // pred_fallthru
    _
  // Predicated region
  $region34: #{cnn_forward.1} parent=0 // pred_check
    _
  $region35: #{cnn_forward.1} parent=0 // pred_check_branch
    %33 = sbr.rel (0) target = $region37
  $region36: #{cnn_forward.1} parent=0 // pred_region
    _
  $region37: #{cnn_forward.1} parent=0 // pred_fallthru
    _
  // Predicated region
  $region38: #{cnn_forward.1} parent=0 // pred_check
    _
  $region39: #{cnn_forward.1} parent=0 // pred_check_branch
    %35 = sbr.rel (0) target = $region41
  $region40: #{cnn_forward.1} parent=0 // pred_region
    _
  $region41: #{cnn_forward.1} parent=0 // pred_fallthru
    _
  // Predicated region
  $region42: #{cnn_forward.1} parent=0 // pred_check
    _
  $region43: #{cnn_forward.1} parent=0 // pred_check_branch
    %37 = sbr.rel (0) target = $region45
  $region44: #{cnn_forward.1} parent=0 // pred_region
    _
  $region45: #{cnn_forward.1} parent=0 // pred_fallthru
    _
  %v39 = vld [vmem:[%s0] sm:$0xf]
  %v40 = vld [vmem:[%s0 + $0x4] sm:$0xf]
  %v41 = vld [vmem:[%s0 + $0x8] sm:$0xf]
  %v42 = vld [vmem:[%s0 + $0xc] sm:$0xf]
  %v43 = vld [vmem:[%s0 + $0x10] sm:$0xf]
  %v44 = vld [vmem:[%s0 + $0x14] sm:$0xf]
  %v45 = vld [vmem:[%s0 + $0x18] sm:$0xf]
  %v46 = vld [vmem:[%s0 + $0x1c] sm:$0xf]
  %v47 = vld [vmem:[%s0 + $0x20] sm:$0xf]
  %v48 = vld [vmem:[%s0 + $0x24] sm:$0xf]
  %v49 = vld [vmem:[%s0 + $0x28] sm:$0xf]
  %v50 = vld [vmem:[%s0 + $0x2c] sm:$0xf]
  %v51 = vld [vmem:[%s0 + $0x30] sm:$0xf]
  %v52 = vld [vmem:[%s0 + $0x34] sm:$0xf]
  %v53 = vld [vmem:[%s0 + $0x38] sm:$0xf]
  %v54 = vld [vmem:[%s0 + $0x3c] sm:$0xf]
  %v55 = vld [vmem:[%s0 + $0x40] sm:$0xf]
  %v56 = vld [vmem:[%s0 + $0x44] sm:$0xf]
  %v57 = vld [vmem:[%s0 + $0x48] sm:$0xf]
  %v58 = vld [vmem:[%s0 + $0x4c] sm:$0xf]
  %v59 = vld [vmem:[%s0 + $0x50] sm:$0xf]
  %v60 = vld [vmem:[%s0 + $0x54] sm:$0xf]
  %v61 = vld [vmem:[%s0 + $0x58] sm:$0xf]
  %v62 = vld [vmem:[%s0 + $0x5c] sm:$0xf]
  %v63 = vld [vmem:[%s0 + $0x60] sm:$0xf]
  %v64 = vld [vmem:[%s1] sm:$0xff]
  %v65 = vld [vmem:[%s1 + $0x8] sm:$0xf]
  %v66 = vld [vmem:[%s1 + $0xc] sm:$0xff]
  %v67 = vld [vmem:[%s1 + $0x14] sm:$0xf]
  %v68 = vld [vmem:[%s1 + $0x18] sm:$0xff]
  %v69 = vld [vmem:[%s1 + $0x20] sm:$0xf]
  %v70 = vld [vmem:[%s1 + $0x24] sm:$0xff]
  %v71 = vld [vmem:[%s1 + $0x2c] sm:$0xf]
  %v72 = vld [vmem:[%s1 + $0x30] sm:$0xff]
  %v73 = vld [vmem:[%s1 + $0x38] sm:$0xf]
  %v74 = vld [vmem:[%s1 + $0x3c] sm:$0xff]
  %v75 = vld [vmem:[%s1 + $0x44] sm:$0xf]
  %v76 = vld [vmem:[%s1 + $0x48] sm:$0x11]
  %v77 = vld [vmem:[%s1 + $0x50] sm:$0x1]
  %v78 = vld [vmem:[%s2] sm:$0x7]
  %v80 = vlaneseq
  %v81 = vshrl.u32 %v80, 7
  %v82 = vsub.s32 0, %v81
  %v83 = vrot.slane %v78, %v82
  %v84 = vlaneseq
  %v85 = vshrl.u32 %v84, 7
  %v86 = vsub.s32 1, %v85
  %v87 = vrot.slane %v78, %v86
  %v88 = vlaneseq
  %v89 = vshrl.u32 %v88, 7
  %v90 = vsub.s32 2, %v89
  %v91 = vrot.slane %v78, %v90
  %v120 = vunpack.c.l.b16 %v39
  %v121 = vunpack.c.l.b16 %v40
  %v122 = vunpack.c.l.b16 %v41
  %v123 = vunpack.c.l.b16 %v42
  %v124 = vunpack.c.l.b16 %v43
  %v125 = vunpack.c.l.b16 %v44
  %v126 = vunpack.c.l.b16 %v45
  %v127 = vunpack.c.l.b16 %v46
  %v128 = vunpack.c.l.b16 %v47
  %v129 = vunpack.c.l.b16 %v48
  %v130 = vunpack.c.l.b16 %v49
  %v131 = vunpack.c.l.b16 %v50
  %v132 = vunpack.c.l.b16 %v51
  %v133 = vunpack.c.l.b16 %v52
  %v134 = vunpack.c.l.b16 %v53
  %v135 = vunpack.c.l.b16 %v54
  %v136 = vunpack.c.l.b16 %v55
  %v137 = vunpack.c.l.b16 %v56
  %v138 = vunpack.c.l.b16 %v57
  %v139 = vunpack.c.l.b16 %v58
  %v140 = vunpack.c.l.b16 %v59
  %v141 = vunpack.c.l.b16 %v60
  %v142 = vunpack.c.l.b16 %v61
  %v143 = vunpack.c.l.b16 %v62
  %v144 = vunpack.c.l.b16 %v63
  %v145 = vpack.c.b16 %v121, %v120
  %v146 = vpack.c.b16 %v123, %v122
  %v147 = vpack.c.b16 %v125, %v124
  %v148 = vpack.c.b16 %v127, %v126
  %v149 = vpack.c.b16 %v129, %v128
  %v150 = vpack.c.b16 %v131, %v130
  %v151 = vpack.c.b16 %v133, %v132
  %v152 = vpack.c.b16 %v135, %v134
  %v153 = vpack.c.b16 %v137, %v136
  %v154 = vpack.c.b16 %v139, %v138
  %v155 = vpack.c.b16 %v141, %v140
  %v156 = vpack.c.b16 %v143, %v142
  %v157 = vpack.c.b16 %v144, %v144
  %v172 = vunpack.c.l.b16 %v64
  %v173 = vunpack.c.h.b16 %v64
  %v174 = vunpack.c.l.b16 %v65
  %v175 = vunpack.c.l.b16 %v66
  %v176 = vunpack.c.h.b16 %v66
  %v177 = vunpack.c.l.b16 %v67
  %v178 = vunpack.c.l.b16 %v68
  %v179 = vunpack.c.h.b16 %v68
  %v180 = vunpack.c.l.b16 %v69
  %v181 = vunpack.c.l.b16 %v70
  %v182 = vunpack.c.h.b16 %v70
  %v183 = vunpack.c.l.b16 %v71
  %v184 = vunpack.c.l.b16 %v72
  %v185 = vunpack.c.h.b16 %v72
  %v186 = vunpack.c.l.b16 %v73
  %v187 = vunpack.c.l.b16 %v74
  %v188 = vunpack.c.h.b16 %v74
  %v189 = vunpack.c.l.b16 %v75
  %v190 = vunpack.c.l.b16 %v76
  %v191 = vunpack.c.h.b16 %v76
  %v192 = vunpack.c.l.b16 %v77
  %v193 = vpack.c.b16 %v175, %v172
  %v194 = vpack.c.b16 %v176, %v173
  %v195 = vpack.c.b16 %v177, %v174
  %v196 = vpack.c.b16 %v181, %v178
  %v197 = vpack.c.b16 %v182, %v179
  %v198 = vpack.c.b16 %v183, %v180
  %v199 = vpack.c.b16 %v187, %v184
  %v200 = vpack.c.b16 %v188, %v185
  %v201 = vpack.c.b16 %v189, %v186
  %v202 = vpack.c.b16 %v190, %v190
  %v203 = vpack.c.b16 %v191, %v191
  %v204 = vpack.c.b16 %v192, %v192
  %vm214 = vcmask 400384
  %v216 = vsel %vm214, %v145, 0
  %v219 = vsel %vm214, %v146, 0
  %v222 = vsel %vm214, %v147, 0
  %v225 = vsel %vm214, %v148, 0
  %v228 = vsel %vm214, %v149, 0
  %v231 = vsel %vm214, %v150, 0
  %v234 = vsel %vm214, %v151, 0
  %v237 = vsel %vm214, %v152, 0
  %v240 = vsel %vm214, %v153, 0
  %v243 = vsel %vm214, %v154, 0
  %v246 = vsel %vm214, %v155, 0
  %v249 = vsel %vm214, %v156, 0
  %v252 = vsel %vm214, %v157, 0
  %vm254 = vcmask 1040384
  %v255 = vsel 0, 4294967295, 65535
  %v256 = vsel %vm254, %v255, 0
  %v258 = vand.u32 %v202, %v256
  %v261 = vand.u32 %v203, %v256
  %v264 = vand.u32 %v204, %v256
  %266 = vmatprep.subr.bf16.mxu0 0
  %267 = vmatpush1.bf16.msra.mxu0 0
  %268 = vmatprep.subr.bf16.mxu0 0
  %269 = vmatpush1.bf16.msra.mxu0 0
  %270 = vmatprep.subr.bf16.mxu0 0
  %271 = vmatpush1.bf16.msra.mxu0 0
  %272 = vmatprep.subr.bf16.mxu0 0
  %273 = vmatpush1.bf16.msra.mxu0 0
  %274 = vmatprep.subr.bf16.mxu0 %v261
  %275 = vmatpush1.bf16.msra.mxu0 %v258
  %276 = vmatprep.subr.bf16.mxu0 %v200
  %277 = vmatpush1.bf16.msra.mxu0 %v199
  %278 = vmatprep.subr.bf16.mxu0 %v197
  %279 = vmatpush1.bf16.msra.mxu0 %v196
  %280 = vmatprep.subr.bf16.mxu0 %v194
  %281 = vmatpush1.bf16.msra.mxu0 %v193
  %282 = vmatprep.subr.bf16.mxu0 0
  %283 = vmatpush2.bf16.msra.mxu0 0
  %284 = vmatprep.subr.bf16.mxu0 0
  %285 = vmatpush2.bf16.msra.mxu0 0
  %286 = vmatprep.subr.bf16.mxu0 0
  %287 = vmatpush2.bf16.msra.mxu0 0
  %288 = vmatprep.subr.bf16.mxu0 0
  %289 = vmatpush2.bf16.msra.mxu0 0
  %290 = vmatprep.subr.bf16.mxu0 0
  %291 = vmatpush2.bf16.msra.mxu0 0
  %292 = vmatprep.subr.bf16.mxu0 0
  %293 = vmatpush2.bf16.msra.mxu0 0
  %294 = vmatprep.subr.bf16.mxu0 0
  %295 = vmatpush2.bf16.msra.mxu0 0
  %296 = vmatprep.subr.bf16.mxu0 0
  %297 = vmatpush2.bf16.msra.mxu0 0
  %298 = vmatprep.mubr.bf16.mxu0 0
  %299 = vmatmul.mubr.bf16.gmra.mxu0 %v216
  %v300 = vpop.f32.mrf.mxu0
  %v301 = vadd.f32 %v83, %v300
  %v302 = vpop.f32.mrf.mxu0
  %v303 = vadd.f32 %v87, %v302
  %v304 = vpop.f32.mrf.mxu0
  %v305 = vadd.f32 %v83, %v304
  %v306 = vpop.f32.mrf.mxu0
  %v307 = vadd.f32 %v87, %v306
  %308 = vmatprep.mubr.bf16.mxu0 0
  %309 = vmatmul.mubr.bf16.gmra.mxu0 %v219
  %v310 = vpop.f32.mrf.mxu0
  %v311 = vadd.f32 %v83, %v310
  %v312 = vpop.f32.mrf.mxu0
  %v313 = vadd.f32 %v87, %v312
  %v314 = vpop.f32.mrf.mxu0
  %v315 = vadd.f32 %v83, %v314
  %v316 = vpop.f32.mrf.mxu0
  %v317 = vadd.f32 %v87, %v316
  %318 = vmatprep.mubr.bf16.mxu0 0
  %319 = vmatmul.mubr.bf16.gmra.mxu0 %v222
  %v320 = vpop.f32.mrf.mxu0
  %v321 = vadd.f32 %v83, %v320
  %v322 = vpop.f32.mrf.mxu0
  %v323 = vadd.f32 %v87, %v322
  %v324 = vpop.f32.mrf.mxu0
  %v325 = vadd.f32 %v83, %v324
  %v326 = vpop.f32.mrf.mxu0
  %v327 = vadd.f32 %v87, %v326
  %328 = vmatprep.mubr.bf16.mxu0 0
  %329 = vmatmul.mubr.bf16.gmra.mxu0 %v225
  %v330 = vpop.f32.mrf.mxu0
  %v331 = vadd.f32 %v83, %v330
  %v332 = vpop.f32.mrf.mxu0
  %v333 = vadd.f32 %v87, %v332
  %v334 = vpop.f32.mrf.mxu0
  %v335 = vadd.f32 %v83, %v334
  %v336 = vpop.f32.mrf.mxu0
  %v337 = vadd.f32 %v87, %v336
  %338 = vmatprep.mubr.bf16.mxu0 0
  %339 = vmatmul.mubr.bf16.gmra.mxu0 %v228
  %v340 = vpop.f32.mrf.mxu0
  %v341 = vadd.f32 %v83, %v340
  %v342 = vpop.f32.mrf.mxu0
  %v343 = vadd.f32 %v87, %v342
  %v344 = vpop.f32.mrf.mxu0
  %v345 = vadd.f32 %v83, %v344
  %v346 = vpop.f32.mrf.mxu0
  %v347 = vadd.f32 %v87, %v346
  %348 = vmatprep.mubr.bf16.mxu0 0
  %349 = vmatmul.mubr.bf16.gmra.mxu0 %v231
  %v350 = vpop.f32.mrf.mxu0
  %v351 = vadd.f32 %v83, %v350
  %v352 = vpop.f32.mrf.mxu0
  %v353 = vadd.f32 %v87, %v352
  %v354 = vpop.f32.mrf.mxu0
  %v355 = vadd.f32 %v83, %v354
  %v356 = vpop.f32.mrf.mxu0
  %v357 = vadd.f32 %v87, %v356
  %358 = vmatprep.mubr.bf16.mxu0 0
  %359 = vmatmul.mubr.bf16.gmra.mxu0 %v234
  %v360 = vpop.f32.mrf.mxu0
  %v361 = vadd.f32 %v83, %v360
  %v362 = vpop.f32.mrf.mxu0
  %v363 = vadd.f32 %v87, %v362
  %v364 = vpop.f32.mrf.mxu0
  %v365 = vadd.f32 %v83, %v364
  %v366 = vpop.f32.mrf.mxu0
  %v367 = vadd.f32 %v87, %v366
  %368 = vmatprep.mubr.bf16.mxu0 0
  %369 = vmatmul.mubr.bf16.gmra.mxu0 %v237
  %v370 = vpop.f32.mrf.mxu0
  %v371 = vadd.f32 %v83, %v370
  %v372 = vpop.f32.mrf.mxu0
  %v373 = vadd.f32 %v87, %v372
  %v374 = vpop.f32.mrf.mxu0
  %v375 = vadd.f32 %v83, %v374
  %v376 = vpop.f32.mrf.mxu0
  %v377 = vadd.f32 %v87, %v376
  %378 = vmatprep.mubr.bf16.mxu0 0
  %379 = vmatmul.mubr.bf16.gmra.mxu0 %v240
  %v380 = vpop.f32.mrf.mxu0
  %v381 = vadd.f32 %v83, %v380
  %v382 = vpop.f32.mrf.mxu0
  %v383 = vadd.f32 %v87, %v382
  %v384 = vpop.f32.mrf.mxu0
  %v385 = vadd.f32 %v83, %v384
  %v386 = vpop.f32.mrf.mxu0
  %v387 = vadd.f32 %v87, %v386
  %388 = vmatprep.mubr.bf16.mxu0 0
  %389 = vmatmul.mubr.bf16.gmra.mxu0 %v243
  %v390 = vpop.f32.mrf.mxu0
  %v391 = vadd.f32 %v83, %v390
  %v392 = vpop.f32.mrf.mxu0
  %v393 = vadd.f32 %v87, %v392
  %v394 = vpop.f32.mrf.mxu0
  %v395 = vadd.f32 %v83, %v394
  %v396 = vpop.f32.mrf.mxu0
  %v397 = vadd.f32 %v87, %v396
  %398 = vmatprep.mubr.bf16.mxu0 0
  %399 = vmatmul.mubr.bf16.gmra.mxu0 %v246
  %v400 = vpop.f32.mrf.mxu0
  %v401 = vadd.f32 %v83, %v400
  %v402 = vpop.f32.mrf.mxu0
  %v403 = vadd.f32 %v87, %v402
  %v404 = vpop.f32.mrf.mxu0
  %v405 = vadd.f32 %v83, %v404
  %v406 = vpop.f32.mrf.mxu0
  %v407 = vadd.f32 %v87, %v406
  %408 = vmatprep.mubr.bf16.mxu0 0
  %409 = vmatmul.mubr.bf16.gmra.mxu0 %v249
  %v410 = vpop.f32.mrf.mxu0
  %v411 = vadd.f32 %v83, %v410
  %v412 = vpop.f32.mrf.mxu0
  %v413 = vadd.f32 %v87, %v412
  %v414 = vpop.f32.mrf.mxu0
  %v415 = vadd.f32 %v83, %v414
  %v416 = vpop.f32.mrf.mxu0
  %v417 = vadd.f32 %v87, %v416
  %418 = vmatprep.mubr.bf16.mxu0 0
  %419 = vmatmul.mubr.bf16.gmra.mxu0 %v252
  %v420 = vpop.f32.mrf.mxu0
  %v421 = vadd.f32 %v83, %v420
  %v422 = vpop.f32.mrf.mxu0
  %v423 = vadd.f32 %v87, %v422
  %v424 = vpop.f32.mrf.mxu0
  %v425 = vpop.f32.mrf.mxu0
  %426 = vdwg.mxu0
  %427 = vmatprep.subr.bf16.mxu0 0
  %428 = vmatpush1.bf16.msra.mxu0 0
  %429 = vmatprep.subr.bf16.mxu0 0
  %430 = vmatpush1.bf16.msra.mxu0 0
  %431 = vmatprep.subr.bf16.mxu0 0
  %432 = vmatpush1.bf16.msra.mxu0 0
  %433 = vmatprep.subr.bf16.mxu0 0
  %434 = vmatpush1.bf16.msra.mxu0 0
  %435 = vmatprep.subr.bf16.mxu0 0
  %436 = vmatpush1.bf16.msra.mxu0 %v264
  %437 = vmatprep.subr.bf16.mxu0 0
  %438 = vmatpush1.bf16.msra.mxu0 %v201
  %439 = vmatprep.subr.bf16.mxu0 0
  %440 = vmatpush1.bf16.msra.mxu0 %v198
  %441 = vmatprep.subr.bf16.mxu0 0
  %442 = vmatpush1.bf16.msra.mxu0 %v195
  %443 = vmatprep.subr.bf16.mxu0 0
  %444 = vmatpush2.bf16.msra.mxu0 0
  %445 = vmatprep.subr.bf16.mxu0 0
  %446 = vmatpush2.bf16.msra.mxu0 0
  %447 = vmatprep.subr.bf16.mxu0 0
  %448 = vmatpush2.bf16.msra.mxu0 0
  %449 = vmatprep.subr.bf16.mxu0 0
  %450 = vmatpush2.bf16.msra.mxu0 0
  %451 = vmatprep.subr.bf16.mxu0 0
  %452 = vmatpush2.bf16.msra.mxu0 0
  %453 = vmatprep.subr.bf16.mxu0 0
  %454 = vmatpush2.bf16.msra.mxu0 0
  %455 = vmatprep.subr.bf16.mxu0 0
  %456 = vmatpush2.bf16.msra.mxu0 0
  %457 = vmatprep.subr.bf16.mxu0 0
  %458 = vmatpush2.bf16.msra.mxu0 0
  %459 = vmatprep.mubr.bf16.mxu0 0
  %460 = vmatmul.mubr.bf16.gmra.mxu0 %v216
  %v461 = vpop.f32.mrf.mxu0
  %v462 = vadd.f32 %v91, %v461
  %v463 = vpop.f32.mrf.mxu0
  %v464 = vpop.f32.mrf.mxu0
  %v465 = vadd.f32 %v91, %v464
  %v466 = vpop.f32.mrf.mxu0
  %467 = vmatprep.mubr.bf16.mxu0 0
  %468 = vmatmul.mubr.bf16.gmra.mxu0 %v219
  %v469 = vpop.f32.mrf.mxu0
  %v470 = vadd.f32 %v91, %v469
  %v471 = vpop.f32.mrf.mxu0
  %v472 = vpop.f32.mrf.mxu0
  %v473 = vadd.f32 %v91, %v472
  %v474 = vpop.f32.mrf.mxu0
  %475 = vmatprep.mubr.bf16.mxu0 0
  %476 = vmatmul.mubr.bf16.gmra.mxu0 %v222
  %v477 = vpop.f32.mrf.mxu0
  %v478 = vadd.f32 %v91, %v477
  %v479 = vpop.f32.mrf.mxu0
  %v480 = vpop.f32.mrf.mxu0
  %v481 = vadd.f32 %v91, %v480
  %v482 = vpop.f32.mrf.mxu0
  %483 = vmatprep.mubr.bf16.mxu0 0
  %484 = vmatmul.mubr.bf16.gmra.mxu0 %v225
  %v485 = vpop.f32.mrf.mxu0
  %v486 = vadd.f32 %v91, %v485
  %v487 = vpop.f32.mrf.mxu0
  %v488 = vpop.f32.mrf.mxu0
  %v489 = vadd.f32 %v91, %v488
  %v490 = vpop.f32.mrf.mxu0
  %491 = vmatprep.mubr.bf16.mxu0 0
  %492 = vmatmul.mubr.bf16.gmra.mxu0 %v228
  %v493 = vpop.f32.mrf.mxu0
  %v494 = vadd.f32 %v91, %v493
  %v495 = vpop.f32.mrf.mxu0
  %v496 = vpop.f32.mrf.mxu0
  %v497 = vadd.f32 %v91, %v496
  %v498 = vpop.f32.mrf.mxu0
  %499 = vmatprep.mubr.bf16.mxu0 0
  %500 = vmatmul.mubr.bf16.gmra.mxu0 %v231
  %v501 = vpop.f32.mrf.mxu0
  %v502 = vadd.f32 %v91, %v501
  %v503 = vpop.f32.mrf.mxu0
  %v504 = vpop.f32.mrf.mxu0
  %v505 = vadd.f32 %v91, %v504
  %v506 = vpop.f32.mrf.mxu0
  %507 = vmatprep.mubr.bf16.mxu0 0
  %508 = vmatmul.mubr.bf16.gmra.mxu0 %v234
  %v509 = vpop.f32.mrf.mxu0
  %v510 = vadd.f32 %v91, %v509
  %v511 = vpop.f32.mrf.mxu0
  %v512 = vpop.f32.mrf.mxu0
  %v513 = vadd.f32 %v91, %v512
  %v514 = vpop.f32.mrf.mxu0
  %515 = vmatprep.mubr.bf16.mxu0 0
  %516 = vmatmul.mubr.bf16.gmra.mxu0 %v237
  %v517 = vpop.f32.mrf.mxu0
  %v518 = vadd.f32 %v91, %v517
  %v519 = vpop.f32.mrf.mxu0
  %v520 = vpop.f32.mrf.mxu0
  %v521 = vadd.f32 %v91, %v520
  %v522 = vpop.f32.mrf.mxu0
  %523 = vmatprep.mubr.bf16.mxu0 0
  %524 = vmatmul.mubr.bf16.gmra.mxu0 %v240
  %v525 = vpop.f32.mrf.mxu0
  %v526 = vadd.f32 %v91, %v525
  %v527 = vpop.f32.mrf.mxu0
  %v528 = vpop.f32.mrf.mxu0
  %v529 = vadd.f32 %v91, %v528
  %v530 = vpop.f32.mrf.mxu0
  %531 = vmatprep.mubr.bf16.mxu0 0
  %532 = vmatmul.mubr.bf16.gmra.mxu0 %v243
  %v533 = vpop.f32.mrf.mxu0
  %v534 = vadd.f32 %v91, %v533
  %v535 = vpop.f32.mrf.mxu0
  %v536 = vpop.f32.mrf.mxu0
  %v537 = vadd.f32 %v91, %v536
  %v538 = vpop.f32.mrf.mxu0
  %539 = vmatprep.mubr.bf16.mxu0 0
  %540 = vmatmul.mubr.bf16.gmra.mxu0 %v246
  %v541 = vpop.f32.mrf.mxu0
  %v542 = vadd.f32 %v91, %v541
  %v543 = vpop.f32.mrf.mxu0
  %v544 = vpop.f32.mrf.mxu0
  %v545 = vadd.f32 %v91, %v544
  %v546 = vpop.f32.mrf.mxu0
  %547 = vmatprep.mubr.bf16.mxu0 0
  %548 = vmatmul.mubr.bf16.gmra.mxu0 %v249
  %v549 = vpop.f32.mrf.mxu0
  %v550 = vadd.f32 %v91, %v549
  %v551 = vpop.f32.mrf.mxu0
  %v552 = vpop.f32.mrf.mxu0
  %v553 = vadd.f32 %v91, %v552
  %v554 = vpop.f32.mrf.mxu0
  %555 = vmatprep.mubr.bf16.mxu0 0
  %556 = vmatmul.mubr.bf16.gmra.mxu0 %v252
  %v557 = vpop.f32.mrf.mxu0
  %v558 = vadd.f32 %v91, %v557
  %v559 = vpop.f32.mrf.mxu0
  %v560 = vpop.f32.mrf.mxu0
  %v561 = vpop.f32.mrf.mxu0
  %562 = vdwg.mxu0
  %v563 = vmax.f32 %v301, 0.0
  %v564 = vmax.f32 %v303, 0.0
  %v565 = vmax.f32 %v462, 0.0
  %v566 = vmax.f32 %v305, 0.0
  %v567 = vmax.f32 %v307, 0.0
  %v568 = vmax.f32 %v465, 0.0
  %v569 = vmax.f32 %v311, 0.0
  %v570 = vmax.f32 %v313, 0.0
  %v571 = vmax.f32 %v470, 0.0
  %v572 = vmax.f32 %v315, 0.0
  %v573 = vmax.f32 %v317, 0.0
  %v574 = vmax.f32 %v473, 0.0
  %v575 = vmax.f32 %v321, 0.0
  %v576 = vmax.f32 %v323, 0.0
  %v577 = vmax.f32 %v478, 0.0
  %v578 = vmax.f32 %v325, 0.0
  %v579 = vmax.f32 %v327, 0.0
  %v580 = vmax.f32 %v481, 0.0
  %v581 = vmax.f32 %v331, 0.0
  %v582 = vmax.f32 %v333, 0.0
  %v583 = vmax.f32 %v486, 0.0
  %v584 = vmax.f32 %v335, 0.0
  %v585 = vmax.f32 %v337, 0.0
  %v586 = vmax.f32 %v489, 0.0
  %v587 = vmax.f32 %v341, 0.0
  %v588 = vmax.f32 %v343, 0.0
  %v589 = vmax.f32 %v494, 0.0
  %v590 = vmax.f32 %v345, 0.0
  %v591 = vmax.f32 %v347, 0.0
  %v592 = vmax.f32 %v497, 0.0
  %v593 = vmax.f32 %v351, 0.0
  %v594 = vmax.f32 %v353, 0.0
  %v595 = vmax.f32 %v502, 0.0
  %v596 = vmax.f32 %v355, 0.0
  %v597 = vmax.f32 %v357, 0.0
  %v598 = vmax.f32 %v505, 0.0
  %v599 = vmax.f32 %v361, 0.0
  %v600 = vmax.f32 %v363, 0.0
  %v601 = vmax.f32 %v510, 0.0
  %v602 = vmax.f32 %v365, 0.0
  %v603 = vmax.f32 %v367, 0.0
  %v604 = vmax.f32 %v513, 0.0
  %v605 = vmax.f32 %v371, 0.0
  %v606 = vmax.f32 %v373, 0.0
  %v607 = vmax.f32 %v518, 0.0
  %v608 = vmax.f32 %v375, 0.0
  %v609 = vmax.f32 %v377, 0.0
  %v610 = vmax.f32 %v521, 0.0
  %v611 = vmax.f32 %v381, 0.0
  %v612 = vmax.f32 %v383, 0.0
  %v613 = vmax.f32 %v526, 0.0
  %v614 = vmax.f32 %v385, 0.0
  %v615 = vmax.f32 %v387, 0.0
  %v616 = vmax.f32 %v529, 0.0
  %v617 = vmax.f32 %v391, 0.0
  %v618 = vmax.f32 %v393, 0.0
  %v619 = vmax.f32 %v534, 0.0
  %v620 = vmax.f32 %v395, 0.0
  %v621 = vmax.f32 %v397, 0.0
  %v622 = vmax.f32 %v537, 0.0
  %v623 = vmax.f32 %v401, 0.0
  %v624 = vmax.f32 %v403, 0.0
  %v625 = vmax.f32 %v542, 0.0
  %v626 = vmax.f32 %v405, 0.0
  %v627 = vmax.f32 %v407, 0.0
  %v628 = vmax.f32 %v545, 0.0
  %v629 = vmax.f32 %v411, 0.0
  %v630 = vmax.f32 %v413, 0.0
  %v631 = vmax.f32 %v550, 0.0
  %v632 = vmax.f32 %v415, 0.0
  %v633 = vmax.f32 %v417, 0.0
  %v634 = vmax.f32 %v553, 0.0
  %v635 = vmax.f32 %v421, 0.0
  %v636 = vmax.f32 %v423, 0.0
  %v637 = vmax.f32 %v558, 0.0
  %v638 = vpack.c.bf16 %v566, %v563
  %v639 = vpack.c.bf16 %v567, %v564
  %v640 = vpack.c.bf16 %v568, %v565
  %v641 = vpack.c.bf16 %v572, %v569
  %v642 = vpack.c.bf16 %v573, %v570
  %v643 = vpack.c.bf16 %v574, %v571
  %v644 = vpack.c.bf16 %v578, %v575
  %v645 = vpack.c.bf16 %v579, %v576
  %v646 = vpack.c.bf16 %v580, %v577
  %v647 = vpack.c.bf16 %v584, %v581
  %v648 = vpack.c.bf16 %v585, %v582
  %v649 = vpack.c.bf16 %v586, %v583
  %v650 = vpack.c.bf16 %v590, %v587
  %v651 = vpack.c.bf16 %v591, %v588
  %v652 = vpack.c.bf16 %v592, %v589
  %v653 = vpack.c.bf16 %v596, %v593
  %v654 = vpack.c.bf16 %v597, %v594
  %v655 = vpack.c.bf16 %v598, %v595
  %v656 = vpack.c.bf16 %v602, %v599
  %v657 = vpack.c.bf16 %v603, %v600
  %v658 = vpack.c.bf16 %v604, %v601
  %v659 = vpack.c.bf16 %v608, %v605
  %v660 = vpack.c.bf16 %v609, %v606
  %v661 = vpack.c.bf16 %v610, %v607
  %v662 = vpack.c.bf16 %v614, %v611
  %v663 = vpack.c.bf16 %v615, %v612
  %v664 = vpack.c.bf16 %v616, %v613
  %v665 = vpack.c.bf16 %v620, %v617
  %v666 = vpack.c.bf16 %v621, %v618
  %v667 = vpack.c.bf16 %v622, %v619
  %v668 = vpack.c.bf16 %v626, %v623
  %v669 = vpack.c.bf16 %v627, %v624
  %v670 = vpack.c.bf16 %v628, %v625
  %v671 = vpack.c.bf16 %v632, %v629
  %v672 = vpack.c.bf16 %v633, %v630
  %v673 = vpack.c.bf16 %v634, %v631
  %v674 = vpack.c.bf16 %v635, %v635
  %v675 = vpack.c.bf16 %v636, %v636
  %v676 = vpack.c.bf16 %v637, %v637
  %v677 = vld [vmem:[%s3] sm:$0xf]
  %v678 = vld [vmem:[%s3 + $0x4] sm:$0xf]
  %v679 = vld [vmem:[%s3 + $0x8] sm:$0xf]
  %v680 = vld [vmem:[%s3 + $0xc] sm:$0xf]
  %v681 = vld [vmem:[%s3 + $0x10] sm:$0xf]
  %v682 = vld [vmem:[%s3 + $0x14] sm:$0xf]
  %v683 = vld [vmem:[%s3 + $0x18] sm:$0xf]
  %v684 = vld [vmem:[%s3 + $0x1c] sm:$0xf]
  %v685 = vld [vmem:[%s3 + $0x20] sm:$0xf]
  %v686 = vld [vmem:[%s3 + $0x24] sm:$0xf]
  %v687 = vld [vmem:[%s3 + $0x28] sm:$0xf]
  %v688 = vld [vmem:[%s3 + $0x2c] sm:$0xf]
  %v689 = vld [vmem:[%s3 + $0x30] sm:$0xf]
  %v690 = vld [vmem:[%s3 + $0x34] sm:$0xf]
  %v691 = vld [vmem:[%s3 + $0x38] sm:$0xf]
  %v692 = vld [vmem:[%s3 + $0x3c] sm:$0xf]
  %v693 = vld [vmem:[%s3 + $0x40] sm:$0xf]
  %v694 = vld [vmem:[%s3 + $0x44] sm:$0xf]
  %v695 = vld [vmem:[%s3 + $0x48] sm:$0xf]
  %v696 = vld [vmem:[%s3 + $0x4c] sm:$0xf]
  %v697 = vld [vmem:[%s3 + $0x50] sm:$0xf]
  %v698 = vld [vmem:[%s3 + $0x54] sm:$0xf]
  %v699 = vld [vmem:[%s3 + $0x58] sm:$0xf]
  %v700 = vld [vmem:[%s3 + $0x5c] sm:$0xf]
  %v701 = vld [vmem:[%s3 + $0x60] sm:$0xf]
  %v702 = vld [vmem:[%s3 + $0x64] sm:$0xf]
  %v703 = vld [vmem:[%s3 + $0x68] sm:$0xf]
  %v704 = vld [vmem:[%s3 + $0x6c] sm:$0xf]
  %v705 = vld [vmem:[%s3 + $0x70] sm:$0xf]
  %v706 = vld [vmem:[%s3 + $0x74] sm:$0xf]
  %v707 = vld [vmem:[%s3 + $0x78] sm:$0xf]
  %v708 = vld [vmem:[%s3 + $0x7c] sm:$0xf]
  %v709 = vld [vmem:[%s3 + $0x80] sm:$0xf]
  %v710 = vld [vmem:[%s3 + $0x84] sm:$0xf]
  %v711 = vld [vmem:[%s3 + $0x88] sm:$0xf]
  %v712 = vld [vmem:[%s3 + $0x8c] sm:$0xf]
  %v713 = vld [vmem:[%s4] sm:$0x1]
  %v715 = vlaneseq
  %v716 = vshrl.u32 %v715, 7
  %v717 = vsub.s32 0, %v716
  %v718 = vrot.slane %v713, %v717
  %v756 = vunpack.c.l.b16 %v677
  %v757 = vunpack.c.l.b16 %v678
  %v758 = vunpack.c.l.b16 %v679
  %v759 = vunpack.c.l.b16 %v680
  %v760 = vunpack.c.l.b16 %v681
  %v761 = vunpack.c.l.b16 %v682
  %v762 = vunpack.c.l.b16 %v683
  %v763 = vunpack.c.l.b16 %v684
  %v764 = vunpack.c.l.b16 %v685
  %v765 = vunpack.c.l.b16 %v686
  %v766 = vunpack.c.l.b16 %v687
  %v767 = vunpack.c.l.b16 %v688
  %v768 = vunpack.c.l.b16 %v689
  %v769 = vunpack.c.l.b16 %v690
  %v770 = vunpack.c.l.b16 %v691
  %v771 = vunpack.c.l.b16 %v692
  %v772 = vunpack.c.l.b16 %v693
  %v773 = vunpack.c.l.b16 %v694
  %v774 = vunpack.c.l.b16 %v695
  %v775 = vunpack.c.l.b16 %v696
  %v776 = vunpack.c.l.b16 %v697
  %v777 = vunpack.c.l.b16 %v698
  %v778 = vunpack.c.l.b16 %v699
  %v779 = vunpack.c.l.b16 %v700
  %v780 = vunpack.c.l.b16 %v701
  %v781 = vunpack.c.l.b16 %v702
  %v782 = vunpack.c.l.b16 %v703
  %v783 = vunpack.c.l.b16 %v704
  %v784 = vunpack.c.l.b16 %v705
  %v785 = vunpack.c.l.b16 %v706
  %v786 = vunpack.c.l.b16 %v707
  %v787 = vunpack.c.l.b16 %v708
  %v788 = vunpack.c.l.b16 %v709
  %v789 = vunpack.c.l.b16 %v710
  %v790 = vunpack.c.l.b16 %v711
  %v791 = vunpack.c.l.b16 %v712
  %v792 = vpack.c.b16 %v757, %v756
  %v793 = vpack.c.b16 %v759, %v758
  %v794 = vpack.c.b16 %v761, %v760
  %v795 = vpack.c.b16 %v763, %v762
  %v796 = vpack.c.b16 %v765, %v764
  %v797 = vpack.c.b16 %v767, %v766
  %v798 = vpack.c.b16 %v769, %v768
  %v799 = vpack.c.b16 %v771, %v770
  %v800 = vpack.c.b16 %v773, %v772
  %v801 = vpack.c.b16 %v775, %v774
  %v802 = vpack.c.b16 %v777, %v776
  %v803 = vpack.c.b16 %v779, %v778
  %v804 = vpack.c.b16 %v781, %v780
  %v805 = vpack.c.b16 %v783, %v782
  %v806 = vpack.c.b16 %v785, %v784
  %v807 = vpack.c.b16 %v787, %v786
  %v808 = vpack.c.b16 %v789, %v788
  %v809 = vpack.c.b16 %v791, %v790
  %vm828 = vcmask 261120
  %v830 = vsel %vm828, %v640, 0
  %v833 = vsel %vm828, %v643, 0
  %v836 = vsel %vm828, %v646, 0
  %v839 = vsel %vm828, %v649, 0
  %v842 = vsel %vm828, %v652, 0
  %v845 = vsel %vm828, %v655, 0
  %v848 = vsel %vm828, %v658, 0
  %v851 = vsel %vm828, %v661, 0
  %v854 = vsel %vm828, %v664, 0
  %v857 = vsel %vm828, %v667, 0
  %v860 = vsel %vm828, %v670, 0
  %v863 = vsel %vm828, %v673, 0
  %v866 = vsel %vm828, %v676, 0
  %868 = vmatprep.subr.bf16.mxu0 0
  %869 = vmatpush1.bf16.msra.mxu0 %v799
  %870 = vmatprep.subr.bf16.mxu0 0
  %871 = vmatpush1.bf16.msra.mxu0 %v798
  %872 = vmatprep.subr.bf16.mxu0 0
  %873 = vmatpush1.bf16.msra.mxu0 %v797
  %874 = vmatprep.subr.bf16.mxu0 0
  %875 = vmatpush1.bf16.msra.mxu0 %v796
  %876 = vmatprep.subr.bf16.mxu0 0
  %877 = vmatpush1.bf16.msra.mxu0 %v795
  %878 = vmatprep.subr.bf16.mxu0 0
  %879 = vmatpush1.bf16.msra.mxu0 %v794
  %880 = vmatprep.subr.bf16.mxu0 0
  %881 = vmatpush1.bf16.msra.mxu0 %v793
  %882 = vmatprep.subr.bf16.mxu0 0
  %883 = vmatpush1.bf16.msra.mxu0 %v792
  %884 = vmatprep.subr.bf16.mxu0 0
  %885 = vmatpush2.bf16.msra.mxu0 %v807
  %886 = vmatprep.subr.bf16.mxu0 0
  %887 = vmatpush2.bf16.msra.mxu0 %v806
  %888 = vmatprep.subr.bf16.mxu0 0
  %889 = vmatpush2.bf16.msra.mxu0 %v805
  %890 = vmatprep.subr.bf16.mxu0 0
  %891 = vmatpush2.bf16.msra.mxu0 %v804
  %892 = vmatprep.subr.bf16.mxu0 0
  %893 = vmatpush2.bf16.msra.mxu0 %v803
  %894 = vmatprep.subr.bf16.mxu0 0
  %895 = vmatpush2.bf16.msra.mxu0 %v802
  %896 = vmatprep.subr.bf16.mxu0 0
  %897 = vmatpush2.bf16.msra.mxu0 %v801
  %898 = vmatprep.subr.bf16.mxu0 0
  %899 = vmatpush2.bf16.msra.mxu0 %v800
  %900 = vmatprep.mubr.bf16.mxu0 %v639
  %901 = vmatmul.mubr.bf16.gmra.mxu0 %v638
  %v902 = vpop.f32.mrf.mxu0
  %v903 = vadd.f32 %v718, %v902
  %v904 = vpop.f32.mrf.mxu0
  %v905 = vpop.f32.mrf.mxu0
  %v906 = vadd.f32 %v718, %v905
  %v907 = vpop.f32.mrf.mxu0
  %908 = vmatprep.mubr.bf16.mxu0 %v642
  %909 = vmatmul.mubr.bf16.gmra.mxu0 %v641
  %v910 = vpop.f32.mrf.mxu0
  %v911 = vadd.f32 %v718, %v910
  %v912 = vpop.f32.mrf.mxu0
  %v913 = vpop.f32.mrf.mxu0
  %v914 = vadd.f32 %v718, %v913
  %v915 = vpop.f32.mrf.mxu0
  %916 = vmatprep.mubr.bf16.mxu0 %v645
  %917 = vmatmul.mubr.bf16.gmra.mxu0 %v644
  %v918 = vpop.f32.mrf.mxu0
  %v919 = vadd.f32 %v718, %v918
  %v920 = vpop.f32.mrf.mxu0
  %v921 = vpop.f32.mrf.mxu0
  %v922 = vadd.f32 %v718, %v921
  %v923 = vpop.f32.mrf.mxu0
  %924 = vmatprep.mubr.bf16.mxu0 %v648
  %925 = vmatmul.mubr.bf16.gmra.mxu0 %v647
  %v926 = vpop.f32.mrf.mxu0
  %v927 = vadd.f32 %v718, %v926
  %v928 = vpop.f32.mrf.mxu0
  %v929 = vpop.f32.mrf.mxu0
  %v930 = vadd.f32 %v718, %v929
  %v931 = vpop.f32.mrf.mxu0
  %932 = vmatprep.mubr.bf16.mxu0 %v651
  %933 = vmatmul.mubr.bf16.gmra.mxu0 %v650
  %v934 = vpop.f32.mrf.mxu0
  %v935 = vadd.f32 %v718, %v934
  %v936 = vpop.f32.mrf.mxu0
  %v937 = vpop.f32.mrf.mxu0
  %v938 = vadd.f32 %v718, %v937
  %v939 = vpop.f32.mrf.mxu0
  %940 = vmatprep.mubr.bf16.mxu0 %v654
  %941 = vmatmul.mubr.bf16.gmra.mxu0 %v653
  %v942 = vpop.f32.mrf.mxu0
  %v943 = vadd.f32 %v718, %v942
  %v944 = vpop.f32.mrf.mxu0
  %v945 = vpop.f32.mrf.mxu0
  %v946 = vadd.f32 %v718, %v945
  %v947 = vpop.f32.mrf.mxu0
  %948 = vmatprep.mubr.bf16.mxu0 %v657
  %949 = vmatmul.mubr.bf16.gmra.mxu0 %v656
  %v950 = vpop.f32.mrf.mxu0
  %v951 = vadd.f32 %v718, %v950
  %v952 = vpop.f32.mrf.mxu0
  %v953 = vpop.f32.mrf.mxu0
  %v954 = vadd.f32 %v718, %v953
  %v955 = vpop.f32.mrf.mxu0
  %956 = vmatprep.mubr.bf16.mxu0 %v660
  %957 = vmatmul.mubr.bf16.gmra.mxu0 %v659
  %v958 = vpop.f32.mrf.mxu0
  %v959 = vadd.f32 %v718, %v958
  %v960 = vpop.f32.mrf.mxu0
  %v961 = vpop.f32.mrf.mxu0
  %v962 = vadd.f32 %v718, %v961
  %v963 = vpop.f32.mrf.mxu0
  %964 = vmatprep.mubr.bf16.mxu0 %v663
  %965 = vmatmul.mubr.bf16.gmra.mxu0 %v662
  %v966 = vpop.f32.mrf.mxu0
  %v967 = vadd.f32 %v718, %v966
  %v968 = vpop.f32.mrf.mxu0
  %v969 = vpop.f32.mrf.mxu0
  %v970 = vadd.f32 %v718, %v969
  %v971 = vpop.f32.mrf.mxu0
  %972 = vmatprep.mubr.bf16.mxu0 %v666
  %973 = vmatmul.mubr.bf16.gmra.mxu0 %v665
  %v974 = vpop.f32.mrf.mxu0
  %v975 = vadd.f32 %v718, %v974
  %v976 = vpop.f32.mrf.mxu0
  %v977 = vpop.f32.mrf.mxu0
  %v978 = vadd.f32 %v718, %v977
  %v979 = vpop.f32.mrf.mxu0
  %980 = vmatprep.mubr.bf16.mxu0 %v669
  %981 = vmatmul.mubr.bf16.gmra.mxu0 %v668
  %v982 = vpop.f32.mrf.mxu0
  %v983 = vadd.f32 %v718, %v982
  %v984 = vpop.f32.mrf.mxu0
  %v985 = vpop.f32.mrf.mxu0
  %v986 = vadd.f32 %v718, %v985
  %v987 = vpop.f32.mrf.mxu0
  %988 = vmatprep.mubr.bf16.mxu0 %v672
  %989 = vmatmul.mubr.bf16.gmra.mxu0 %v671
  %v990 = vpop.f32.mrf.mxu0
  %v991 = vadd.f32 %v718, %v990
  %v992 = vpop.f32.mrf.mxu0
  %v993 = vpop.f32.mrf.mxu0
  %v994 = vadd.f32 %v718, %v993
  %v995 = vpop.f32.mrf.mxu0
  %996 = vmatprep.mubr.bf16.mxu0 %v675
  %997 = vmatmul.mubr.bf16.gmra.mxu0 %v674
  %v998 = vpop.f32.mrf.mxu0
  %v999 = vadd.f32 %v718, %v998
  %v1000 = vpop.f32.mrf.mxu0
  %v1001 = vpop.f32.mrf.mxu0
  %v1002 = vpop.f32.mrf.mxu0
  %1003 = vdwg.mxu0
  %1004 = vmatprep.subr.bf16.mxu0 0
  %1005 = vmatpush1.bf16.msra.mxu0 0
  %1006 = vmatprep.subr.bf16.mxu0 0
  %1007 = vmatpush1.bf16.msra.mxu0 0
  %1008 = vmatprep.subr.bf16.mxu0 0
  %1009 = vmatpush1.bf16.msra.mxu0 0
  %1010 = vmatprep.subr.bf16.mxu0 0
  %1011 = vmatpush1.bf16.msra.mxu0 0
  %1012 = vmatprep.subr.bf16.mxu0 0
  %1013 = vmatpush1.bf16.msra.mxu0 0
  %1014 = vmatprep.subr.bf16.mxu0 0
  %1015 = vmatpush1.bf16.msra.mxu0 0
  %1016 = vmatprep.subr.bf16.mxu0 0
  %1017 = vmatpush1.bf16.msra.mxu0 %v809
  %1018 = vmatprep.subr.bf16.mxu0 0
  %1019 = vmatpush1.bf16.msra.mxu0 %v808
  %1020 = vmatprep.subr.bf16.mxu0 0
  %1021 = vmatpush2.bf16.msra.mxu0 0
  %1022 = vmatprep.subr.bf16.mxu0 0
  %1023 = vmatpush2.bf16.msra.mxu0 0
  %1024 = vmatprep.subr.bf16.mxu0 0
  %1025 = vmatpush2.bf16.msra.mxu0 0
  %1026 = vmatprep.subr.bf16.mxu0 0
  %1027 = vmatpush2.bf16.msra.mxu0 0
  %1028 = vmatprep.subr.bf16.mxu0 0
  %1029 = vmatpush2.bf16.msra.mxu0 0
  %1030 = vmatprep.subr.bf16.mxu0 0
  %1031 = vmatpush2.bf16.msra.mxu0 0
  %1032 = vmatprep.subr.bf16.mxu0 0
  %1033 = vmatpush2.bf16.msra.mxu0 0
  %1034 = vmatprep.subr.bf16.mxu0 0
  %1035 = vmatpush2.bf16.msra.mxu0 0
  %1036 = vmatprep.mubr.bf16.mxu0 0
  %1037 = vmatmul.mubr.bf16.gmra.mxu0 %v830
  %v1038 = vpop.f32.mrf.mxu0
  %v1039 = vadd.f32 %v903, %v1038
  %v1040 = vpop.f32.mrf.mxu0
  %v1041 = vpop.f32.mrf.mxu0
  %v1042 = vadd.f32 %v906, %v1041
  %v1043 = vpop.f32.mrf.mxu0
  %1044 = vmatprep.mubr.bf16.mxu0 0
  %1045 = vmatmul.mubr.bf16.gmra.mxu0 %v833
  %v1046 = vpop.f32.mrf.mxu0
  %v1047 = vadd.f32 %v911, %v1046
  %v1048 = vpop.f32.mrf.mxu0
  %v1049 = vpop.f32.mrf.mxu0
  %v1050 = vadd.f32 %v914, %v1049
  %v1051 = vpop.f32.mrf.mxu0
  %1052 = vmatprep.mubr.bf16.mxu0 0
  %1053 = vmatmul.mubr.bf16.gmra.mxu0 %v836
  %v1054 = vpop.f32.mrf.mxu0
  %v1055 = vadd.f32 %v919, %v1054
  %v1056 = vpop.f32.mrf.mxu0
  %v1057 = vpop.f32.mrf.mxu0
  %v1058 = vadd.f32 %v922, %v1057
  %v1059 = vpop.f32.mrf.mxu0
  %1060 = vmatprep.mubr.bf16.mxu0 0
  %1061 = vmatmul.mubr.bf16.gmra.mxu0 %v839
  %v1062 = vpop.f32.mrf.mxu0
  %v1063 = vadd.f32 %v927, %v1062
  %v1064 = vpop.f32.mrf.mxu0
  %v1065 = vpop.f32.mrf.mxu0
  %v1066 = vadd.f32 %v930, %v1065
  %v1067 = vpop.f32.mrf.mxu0
  %1068 = vmatprep.mubr.bf16.mxu0 0
  %1069 = vmatmul.mubr.bf16.gmra.mxu0 %v842
  %v1070 = vpop.f32.mrf.mxu0
  %v1071 = vadd.f32 %v935, %v1070
  %v1072 = vpop.f32.mrf.mxu0
  %v1073 = vpop.f32.mrf.mxu0
  %v1074 = vadd.f32 %v938, %v1073
  %v1075 = vpop.f32.mrf.mxu0
  %1076 = vmatprep.mubr.bf16.mxu0 0
  %1077 = vmatmul.mubr.bf16.gmra.mxu0 %v845
  %v1078 = vpop.f32.mrf.mxu0
  %v1079 = vadd.f32 %v943, %v1078
  %v1080 = vpop.f32.mrf.mxu0
  %v1081 = vpop.f32.mrf.mxu0
  %v1082 = vadd.f32 %v946, %v1081
  %v1083 = vpop.f32.mrf.mxu0
  %1084 = vmatprep.mubr.bf16.mxu0 0
  %1085 = vmatmul.mubr.bf16.gmra.mxu0 %v848
  %v1086 = vpop.f32.mrf.mxu0
  %v1087 = vadd.f32 %v951, %v1086
  %v1088 = vpop.f32.mrf.mxu0
  %v1089 = vpop.f32.mrf.mxu0
  %v1090 = vadd.f32 %v954, %v1089
  %v1091 = vpop.f32.mrf.mxu0
  %1092 = vmatprep.mubr.bf16.mxu0 0
  %1093 = vmatmul.mubr.bf16.gmra.mxu0 %v851
  %v1094 = vpop.f32.mrf.mxu0
  %v1095 = vadd.f32 %v959, %v1094
  %v1096 = vpop.f32.mrf.mxu0
  %v1097 = vpop.f32.mrf.mxu0
  %v1098 = vadd.f32 %v962, %v1097
  %v1099 = vpop.f32.mrf.mxu0
  %1100 = vmatprep.mubr.bf16.mxu0 0
  %1101 = vmatmul.mubr.bf16.gmra.mxu0 %v854
  %v1102 = vpop.f32.mrf.mxu0
  %v1103 = vadd.f32 %v967, %v1102
  %v1104 = vpop.f32.mrf.mxu0
  %v1105 = vpop.f32.mrf.mxu0
  %v1106 = vadd.f32 %v970, %v1105
  %v1107 = vpop.f32.mrf.mxu0
  %1108 = vmatprep.mubr.bf16.mxu0 0
  %1109 = vmatmul.mubr.bf16.gmra.mxu0 %v857
  %v1110 = vpop.f32.mrf.mxu0
  %v1111 = vadd.f32 %v975, %v1110
  %v1112 = vpop.f32.mrf.mxu0
  %v1113 = vpop.f32.mrf.mxu0
  %v1114 = vadd.f32 %v978, %v1113
  %v1115 = vpop.f32.mrf.mxu0
  %1116 = vmatprep.mubr.bf16.mxu0 0
  %1117 = vmatmul.mubr.bf16.gmra.mxu0 %v860
  %v1118 = vpop.f32.mrf.mxu0
  %v1119 = vadd.f32 %v983, %v1118
  %v1120 = vpop.f32.mrf.mxu0
  %v1121 = vpop.f32.mrf.mxu0
  %v1122 = vadd.f32 %v986, %v1121
  %v1123 = vpop.f32.mrf.mxu0
  %1124 = vmatprep.mubr.bf16.mxu0 0
  %1125 = vmatmul.mubr.bf16.gmra.mxu0 %v863
  %v1126 = vpop.f32.mrf.mxu0
  %v1127 = vadd.f32 %v991, %v1126
  %v1128 = vpop.f32.mrf.mxu0
  %v1129 = vpop.f32.mrf.mxu0
  %v1130 = vadd.f32 %v994, %v1129
  %v1131 = vpop.f32.mrf.mxu0
  %1132 = vmatprep.mubr.bf16.mxu0 0
  %1133 = vmatmul.mubr.bf16.gmra.mxu0 %v866
  %v1134 = vpop.f32.mrf.mxu0
  %v1135 = vadd.f32 %v999, %v1134
  %v1136 = vpop.f32.mrf.mxu0
  %v1137 = vpop.f32.mrf.mxu0
  %v1138 = vpop.f32.mrf.mxu0
  %1139 = vdwg.mxu0
  %v1140 = vmax.f32 %v1039, 0.0
  %v1141 = vmax.f32 %v1042, 0.0
  %v1142 = vmax.f32 %v1047, 0.0
  %v1143 = vmax.f32 %v1050, 0.0
  %v1144 = vmax.f32 %v1055, 0.0
  %v1145 = vmax.f32 %v1058, 0.0
  %v1146 = vmax.f32 %v1063, 0.0
  %v1147 = vmax.f32 %v1066, 0.0
  %v1148 = vmax.f32 %v1071, 0.0
  %v1149 = vmax.f32 %v1074, 0.0
  %v1150 = vmax.f32 %v1079, 0.0
  %v1151 = vmax.f32 %v1082, 0.0
  %v1152 = vmax.f32 %v1087, 0.0
  %v1153 = vmax.f32 %v1090, 0.0
  %v1154 = vmax.f32 %v1095, 0.0
  %v1155 = vmax.f32 %v1098, 0.0
  %v1156 = vmax.f32 %v1103, 0.0
  %v1157 = vmax.f32 %v1106, 0.0
  %v1158 = vmax.f32 %v1111, 0.0
  %v1159 = vmax.f32 %v1114, 0.0
  %v1160 = vmax.f32 %v1119, 0.0
  %v1161 = vmax.f32 %v1122, 0.0
  %v1162 = vmax.f32 %v1127, 0.0
  %v1163 = vmax.f32 %v1130, 0.0
  %v1164 = vmax.f32 %v1135, 0.0
  %v1165 = vpack.c.bf16 %v1141, %v1140
  %v1166 = vpack.c.bf16 %v1143, %v1142
  %v1167 = vpack.c.bf16 %v1145, %v1144
  %v1168 = vpack.c.bf16 %v1147, %v1146
  %v1169 = vpack.c.bf16 %v1149, %v1148
  %v1170 = vpack.c.bf16 %v1151, %v1150
  %v1171 = vpack.c.bf16 %v1153, %v1152
  %v1172 = vpack.c.bf16 %v1155, %v1154
  %v1173 = vpack.c.bf16 %v1157, %v1156
  %v1174 = vpack.c.bf16 %v1159, %v1158
  %v1175 = vpack.c.bf16 %v1161, %v1160
  %v1176 = vpack.c.bf16 %v1163, %v1162
  %v1177 = vpack.c.bf16 %v1164, %v1164
  %v1191 = vunpack.c.l.b16 %v1165
  %v1192 = vunpack.c.h.b16 %v1165
  %v1193 = vunpack.c.l.b16 %v1166
  %v1194 = vunpack.c.h.b16 %v1166
  %v1195 = vunpack.c.l.b16 %v1167
  %v1196 = vunpack.c.h.b16 %v1167
  %v1197 = vunpack.c.l.b16 %v1168
  %v1198 = vunpack.c.h.b16 %v1168
  %v1199 = vunpack.c.l.b16 %v1169
  %v1200 = vunpack.c.h.b16 %v1169
  %v1201 = vunpack.c.l.b16 %v1170
  %v1202 = vunpack.c.h.b16 %v1170
  %v1203 = vunpack.c.l.b16 %v1171
  %v1204 = vunpack.c.h.b16 %v1171
  %v1205 = vunpack.c.l.b16 %v1172
  %v1206 = vunpack.c.h.b16 %v1172
  %v1207 = vunpack.c.l.b16 %v1173
  %v1208 = vunpack.c.h.b16 %v1173
  %v1209 = vunpack.c.l.b16 %v1174
  %v1210 = vunpack.c.h.b16 %v1174
  %v1211 = vunpack.c.l.b16 %v1175
  %v1212 = vunpack.c.h.b16 %v1175
  %v1213 = vunpack.c.l.b16 %v1176
  %v1214 = vunpack.c.h.b16 %v1176
  %v1215 = vunpack.c.l.b16 %v1177
  %v1216 = vpack.c.b16 %v1191, %v1191
  %v1217 = vpack.c.b16 %v1193, %v1193
  %v1218 = vpack.c.b16 %v1195, %v1195
  %v1219 = vpack.c.b16 %v1197, %v1197
  %v1220 = vpack.c.b16 %v1199, %v1199
  %v1221 = vpack.c.b16 %v1201, %v1201
  %v1222 = vpack.c.b16 %v1203, %v1203
  %v1223 = vpack.c.b16 %v1205, %v1205
  %v1224 = vpack.c.b16 %v1207, %v1207
  %v1225 = vpack.c.b16 %v1209, %v1209
  %v1226 = vpack.c.b16 %v1211, %v1211
  %v1227 = vpack.c.b16 %v1213, %v1213
  %v1228 = vpack.c.b16 %v1215, %v1215
  %v1229 = vpack.c.b16 %v1192, %v1192
  %1230 = vrot.lane.b32.xlu0 %v1229, 64
  %v1231 = vpop.permute.xlu0 %1230
  %v1232 = vpack.c.b16 %v1196, %v1196
  %1233 = vrot.lane.b32.xlu0 %v1232, 64
  %v1234 = vpop.permute.xlu0 %1233
  %v1235 = vpack.c.b16 %v1198, %v1198
  %1236 = vrot.lane.b32.xlu0 %v1235, 64
  %v1237 = vpop.permute.xlu0 %1236
  %v1238 = vpack.c.b16 %v1202, %v1202
  %1239 = vrot.lane.b32.xlu0 %v1238, 64
  %v1240 = vpop.permute.xlu0 %1239
  %vm1241 = vcmask 523264
  %v1244 = vsel %vm1241, %v1216, %v1231
  %v1247 = vsel %vm1241, %v1217, %v1234
  %v1250 = vsel %vm1241, %v1219, %v1237
  %v1253 = vsel %vm1241, %v1221, %v1240
  %v1254 = vpack.c.b16 %v1194, %v1194
  %1255 = vrot.lane.b32.xlu0 %v1254, 64
  %v1256 = vpop.permute.xlu0 %1255
  %v1257 = vpack.c.b16 %v1200, %v1200
  %1258 = vrot.lane.b32.xlu0 %v1257, 64
  %v1259 = vpop.permute.xlu0 %1258
  %v1260 = vpack.c.b16 %v1204, %v1204
  %1261 = vrot.lane.b32.xlu0 %v1260, 64
  %v1262 = vpop.permute.xlu0 %1261
  %v1264 = vsel %vm1241, %v1217, %v1256
  %v1266 = vsel %vm1241, %v1218, %v1237
  %v1269 = vsel %vm1241, %v1220, %v1259
  %v1272 = vsel %vm1241, %v1222, %v1262
  %v1273 = vpack.c.b16 %v1206, %v1206
  %1274 = vrot.lane.b32.xlu0 %v1273, 64
  %v1275 = vpop.permute.xlu0 %1274
  %v1276 = vpack.c.b16 %v1208, %v1208
  %1277 = vrot.lane.b32.xlu0 %v1276, 64
  %v1278 = vpop.permute.xlu0 %1277
  %v1279 = vpack.c.b16 %v1212, %v1212
  %1280 = vrot.lane.b32.xlu0 %v1279, 64
  %v1281 = vpop.permute.xlu0 %1280
  %v1283 = vsel %vm1241, %v1222, %v1275
  %v1286 = vsel %vm1241, %v1224, %v1278
  %v1289 = vsel %vm1241, %v1226, %v1281
  %v1290 = vpack.c.b16 %v1210, %v1210
  %1291 = vrot.lane.b32.xlu0 %v1290, 64
  %v1292 = vpop.permute.xlu0 %1291
  %v1293 = vpack.c.b16 %v1214, %v1214
  %1294 = vrot.lane.b32.xlu0 %v1293, 64
  %v1295 = vpop.permute.xlu0 %1294
  %v1297 = vsel %vm1241, %v1223, %v1278
  %v1300 = vsel %vm1241, %v1225, %v1292
  %v1303 = vsel %vm1241, %v1227, %v1295
  %v1308 = vrot.slane %v1264, 4
  %v1309 = vrot.slane %v1266, 4
  %v1310 = vrot.slane %v1269, 4
  %v1311 = vrot.slane %v1272, 4
  %v1312 = vrot.slane %v1223, 4
  %v1316 = vrot.slane %v1297, 4
  %v1317 = vrot.slane %v1300, 4
  %v1318 = vrot.slane %v1303, 4
  %v1319 = vrot.slane %v1228, 4
  %vm1320 = vcmask 1043456
  %v1322 = vsel %vm1320, %v1244, %v1308
  %v1325 = vsel %vm1320, %v1247, %v1309
  %v1328 = vsel %vm1320, %v1250, %v1310
  %v1331 = vsel %vm1320, %v1253, %v1311
  %v1334 = vsel %vm1320, %v1222, %v1312
  %v1336 = vsel %vm1320, %v1283, %v1316
  %v1339 = vsel %vm1320, %v1286, %v1317
  %v1342 = vsel %vm1320, %v1289, %v1318
  %v1345 = vsel %vm1320, %v1227, %v1319
  %v1346 = vld [vmem:[%s5] sm:$0xf]
  %v1347 = vld [vmem:[%s5 + $0x4] sm:$0xf]
  %v1348 = vld [vmem:[%s5 + $0x8] sm:$0xf]
  %v1349 = vld [vmem:[%s5 + $0xc] sm:$0xf]
  %v1350 = vld [vmem:[%s5 + $0x10] sm:$0xf]
  %v1351 = vld [vmem:[%s5 + $0x14] sm:$0xf]
  %v1352 = vld [vmem:[%s5 + $0x18] sm:$0xf]
  %v1353 = vld [vmem:[%s5 + $0x1c] sm:$0xf]
  %v1354 = vld [vmem:[%s5 + $0x20] sm:$0xf]
  %v1355 = vld [vmem:[%s5 + $0x24] sm:$0xf]
  %v1356 = vld [vmem:[%s5 + $0x28] sm:$0xf]
  %v1357 = vld [vmem:[%s5 + $0x2c] sm:$0xf]
  %v1358 = vld [vmem:[%s5 + $0x30] sm:$0xf]
  %v1359 = vld [vmem:[%s5 + $0x34] sm:$0xf]
  %v1360 = vld [vmem:[%s5 + $0x38] sm:$0xf]
  %v1361 = vld [vmem:[%s5 + $0x3c] sm:$0xf]
  %v1362 = vld [vmem:[%s5 + $0x40] sm:$0xf]
  %v1363 = vld [vmem:[%s5 + $0x44] sm:$0xf]
  %v1364 = vld [vmem:[%s5 + $0x48] sm:$0xf]
  %v1365 = vld [vmem:[%s5 + $0x4c] sm:$0xf]
  %v1366 = vld [vmem:[%s5 + $0x50] sm:$0xf]
  %v1367 = vld [vmem:[%s5 + $0x54] sm:$0xf]
  %v1368 = vld [vmem:[%s5 + $0x58] sm:$0xf]
  %v1369 = vld [vmem:[%s5 + $0x5c] sm:$0xf]
  %v1370 = vld [vmem:[%s5 + $0x60] sm:$0xf]
  %v1371 = vld [vmem:[%s5 + $0x64] sm:$0xf]
  %v1372 = vld [vmem:[%s5 + $0x68] sm:$0xf]
  %v1373 = vld [vmem:[%s5 + $0x6c] sm:$0xf]
  %v1374 = vld [vmem:[%s5 + $0x70] sm:$0xf]
  %v1375 = vld [vmem:[%s5 + $0x74] sm:$0xf]
  %v1376 = vld [vmem:[%s5 + $0x78] sm:$0xf]
  %v1377 = vld [vmem:[%s5 + $0x7c] sm:$0xf]
  %v1378 = vld [vmem:[%s5 + $0x80] sm:$0xf]
  %v1379 = vld [vmem:[%s5 + $0x84] sm:$0xf]
  %v1380 = vld [vmem:[%s5 + $0x88] sm:$0xf]
  %v1381 = vld [vmem:[%s5 + $0x8c] sm:$0xf]
  %v1382 = vld [vmem:[%s5 + $0x90] sm:$0xf]
  %v1383 = vld [vmem:[%s5 + $0x94] sm:$0xf]
  %v1384 = vld [vmem:[%s5 + $0x98] sm:$0xf]
  %v1385 = vld [vmem:[%s5 + $0x9c] sm:$0xf]
  %v1386 = vld [vmem:[%s5 + $0xa0] sm:$0xf]
  %v1387 = vld [vmem:[%s5 + $0xa4] sm:$0xf]
  %v1388 = vld [vmem:[%s5 + $0xa8] sm:$0xf]
  %v1389 = vld [vmem:[%s5 + $0xac] sm:$0xf]
  %v1390 = vld [vmem:[%s5 + $0xb0] sm:$0xf]
  %v1391 = vld [vmem:[%s5 + $0xb4] sm:$0xf]
  %v1392 = vld [vmem:[%s5 + $0xb8] sm:$0xf]
  %v1393 = vld [vmem:[%s5 + $0xbc] sm:$0xf]
  %v1394 = vld [vmem:[%s5 + $0xc0] sm:$0xf]
  %v1395 = vld [vmem:[%s5 + $0xc4] sm:$0xf]
  %v1396 = vld [vmem:[%s5 + $0xc8] sm:$0xf]
  %v1397 = vld [vmem:[%s5 + $0xcc] sm:$0xf]
  %v1398 = vld [vmem:[%s5 + $0xd0] sm:$0xf]
  %v1399 = vld [vmem:[%s5 + $0xd4] sm:$0xf]
  %v1400 = vld [vmem:[%s5 + $0xd8] sm:$0xf]
  %v1401 = vld [vmem:[%s5 + $0xdc] sm:$0xf]
  %v1402 = vld [vmem:[%s5 + $0xe0] sm:$0xf]
  %v1403 = vld [vmem:[%s5 + $0xe4] sm:$0xf]
  %v1404 = vld [vmem:[%s5 + $0xe8] sm:$0xf]
  %v1405 = vld [vmem:[%s5 + $0xec] sm:$0xf]
  %v1406 = vld [vmem:[%s5 + $0xf0] sm:$0xf]
  %v1407 = vld [vmem:[%s5 + $0xf4] sm:$0xf]
  %v1408 = vld [vmem:[%s5 + $0xf8] sm:$0xf]
  %v1409 = vld [vmem:[%s5 + $0xfc] sm:$0xf]
  %v1410 = vld [vmem:[%s5 + $0x100] sm:$0xf]
  %v1411 = vld [vmem:[%s5 + $0x104] sm:$0xf]
  %v1412 = vld [vmem:[%s5 + $0x108] sm:$0xf]
  %v1413 = vld [vmem:[%s5 + $0x10c] sm:$0xf]
  %v1414 = vld [vmem:[%s5 + $0x110] sm:$0xf]
  %v1415 = vld [vmem:[%s5 + $0x114] sm:$0xf]
  %v1416 = vld [vmem:[%s5 + $0x118] sm:$0xf]
  %v1417 = vld [vmem:[%s5 + $0x11c] sm:$0xf]
  %v1418 = vld [vmem:[%s6] sm:$0x1]
  %v1420 = vlaneseq
  %v1421 = vshrl.u32 %v1420, 7
  %v1422 = vsub.s32 0, %v1421
  %v1423 = vrot.slane %v1418, %v1422
  %v1497 = vunpack.c.l.b16 %v1346
  %v1498 = vunpack.c.l.b16 %v1347
  %v1499 = vunpack.c.l.b16 %v1348
  %v1500 = vunpack.c.l.b16 %v1349
  %v1501 = vunpack.c.l.b16 %v1350
  %v1502 = vunpack.c.l.b16 %v1351
  %v1503 = vunpack.c.l.b16 %v1352
  %v1504 = vunpack.c.l.b16 %v1353
  %v1505 = vunpack.c.l.b16 %v1354
  %v1506 = vunpack.c.l.b16 %v1355
  %v1507 = vunpack.c.l.b16 %v1356
  %v1508 = vunpack.c.l.b16 %v1357
  %v1509 = vunpack.c.l.b16 %v1358
  %v1510 = vunpack.c.l.b16 %v1359
  %v1511 = vunpack.c.l.b16 %v1360
  %v1512 = vunpack.c.l.b16 %v1361
  %v1513 = vunpack.c.l.b16 %v1362
  %v1514 = vunpack.c.l.b16 %v1363
  %v1515 = vunpack.c.l.b16 %v1364
  %v1516 = vunpack.c.l.b16 %v1365
  %v1517 = vunpack.c.l.b16 %v1366
  %v1518 = vunpack.c.l.b16 %v1367
  %v1519 = vunpack.c.l.b16 %v1368
  %v1520 = vunpack.c.l.b16 %v1369
  %v1521 = vunpack.c.l.b16 %v1370
  %v1522 = vunpack.c.l.b16 %v1371
  %v1523 = vunpack.c.l.b16 %v1372
  %v1524 = vunpack.c.l.b16 %v1373
  %v1525 = vunpack.c.l.b16 %v1374
  %v1526 = vunpack.c.l.b16 %v1375
  %v1527 = vunpack.c.l.b16 %v1376
  %v1528 = vunpack.c.l.b16 %v1377
  %v1529 = vunpack.c.l.b16 %v1378
  %v1530 = vunpack.c.l.b16 %v1379
  %v1531 = vunpack.c.l.b16 %v1380
  %v1532 = vunpack.c.l.b16 %v1381
  %v1533 = vunpack.c.l.b16 %v1382
  %v1534 = vunpack.c.l.b16 %v1383
  %v1535 = vunpack.c.l.b16 %v1384
  %v1536 = vunpack.c.l.b16 %v1385
  %v1537 = vunpack.c.l.b16 %v1386
  %v1538 = vunpack.c.l.b16 %v1387
  %v1539 = vunpack.c.l.b16 %v1388
  %v1540 = vunpack.c.l.b16 %v1389
  %v1541 = vunpack.c.l.b16 %v1390
  %v1542 = vunpack.c.l.b16 %v1391
  %v1543 = vunpack.c.l.b16 %v1392
  %v1544 = vunpack.c.l.b16 %v1393
  %v1545 = vunpack.c.l.b16 %v1394
  %v1546 = vunpack.c.l.b16 %v1395
  %v1547 = vunpack.c.l.b16 %v1396
  %v1548 = vunpack.c.l.b16 %v1397
  %v1549 = vunpack.c.l.b16 %v1398
  %v1550 = vunpack.c.l.b16 %v1399
  %v1551 = vunpack.c.l.b16 %v1400
  %v1552 = vunpack.c.l.b16 %v1401
  %v1553 = vunpack.c.l.b16 %v1402
  %v1554 = vunpack.c.l.b16 %v1403
  %v1555 = vunpack.c.l.b16 %v1404
  %v1556 = vunpack.c.l.b16 %v1405
  %v1557 = vunpack.c.l.b16 %v1406
  %v1558 = vunpack.c.l.b16 %v1407
  %v1559 = vunpack.c.l.b16 %v1408
  %v1560 = vunpack.c.l.b16 %v1409
  %v1561 = vunpack.c.l.b16 %v1410
  %v1562 = vunpack.c.l.b16 %v1411
  %v1563 = vunpack.c.l.b16 %v1412
  %v1564 = vunpack.c.l.b16 %v1413
  %v1565 = vunpack.c.l.b16 %v1414
  %v1566 = vunpack.c.l.b16 %v1415
  %v1567 = vunpack.c.l.b16 %v1416
  %v1568 = vunpack.c.l.b16 %v1417
  %v1569 = vpack.c.b16 %v1498, %v1497
  %v1570 = vpack.c.b16 %v1500, %v1499
  %v1571 = vpack.c.b16 %v1502, %v1501
  %v1572 = vpack.c.b16 %v1504, %v1503
  %v1573 = vpack.c.b16 %v1506, %v1505
  %v1574 = vpack.c.b16 %v1508, %v1507
  %v1575 = vpack.c.b16 %v1510, %v1509
  %v1576 = vpack.c.b16 %v1512, %v1511
  %v1577 = vpack.c.b16 %v1514, %v1513
  %v1578 = vpack.c.b16 %v1516, %v1515
  %v1579 = vpack.c.b16 %v1518, %v1517
  %v1580 = vpack.c.b16 %v1520, %v1519
  %v1581 = vpack.c.b16 %v1522, %v1521
  %v1582 = vpack.c.b16 %v1524, %v1523
  %v1583 = vpack.c.b16 %v1526, %v1525
  %v1584 = vpack.c.b16 %v1528, %v1527
  %v1585 = vpack.c.b16 %v1530, %v1529
  %v1586 = vpack.c.b16 %v1532, %v1531
  %v1587 = vpack.c.b16 %v1534, %v1533
  %v1588 = vpack.c.b16 %v1536, %v1535
  %v1589 = vpack.c.b16 %v1538, %v1537
  %v1590 = vpack.c.b16 %v1540, %v1539
  %v1591 = vpack.c.b16 %v1542, %v1541
  %v1592 = vpack.c.b16 %v1544, %v1543
  %v1593 = vpack.c.b16 %v1546, %v1545
  %v1594 = vpack.c.b16 %v1548, %v1547
  %v1595 = vpack.c.b16 %v1550, %v1549
  %v1596 = vpack.c.b16 %v1552, %v1551
  %v1597 = vpack.c.b16 %v1554, %v1553
  %v1598 = vpack.c.b16 %v1556, %v1555
  %v1599 = vpack.c.b16 %v1558, %v1557
  %v1600 = vpack.c.b16 %v1560, %v1559
  %v1601 = vpack.c.b16 %v1562, %v1561
  %v1602 = vpack.c.b16 %v1564, %v1563
  %v1603 = vpack.c.b16 %v1566, %v1565
  %v1604 = vpack.c.b16 %v1568, %v1567
  %v1641 = vsel %vm1241, %v1334, 0
  %v1643 = vsel %vm1241, %v1345, 0
  %1645 = vmatprep.subr.bf16.mxu0 0
  %1646 = vmatpush1.bf16.msra.mxu0 %v1576
  %1647 = vmatprep.subr.bf16.mxu0 0
  %1648 = vmatpush1.bf16.msra.mxu0 %v1575
  %1649 = vmatprep.subr.bf16.mxu0 0
  %1650 = vmatpush1.bf16.msra.mxu0 %v1574
  %1651 = vmatprep.subr.bf16.mxu0 0
  %1652 = vmatpush1.bf16.msra.mxu0 %v1573
  %1653 = vmatprep.subr.bf16.mxu0 0
  %1654 = vmatpush1.bf16.msra.mxu0 %v1572
  %1655 = vmatprep.subr.bf16.mxu0 0
  %1656 = vmatpush1.bf16.msra.mxu0 %v1571
  %1657 = vmatprep.subr.bf16.mxu0 0
  %1658 = vmatpush1.bf16.msra.mxu0 %v1570
  %1659 = vmatprep.subr.bf16.mxu0 0
  %1660 = vmatpush1.bf16.msra.mxu0 %v1569
  %1661 = vmatprep.subr.bf16.mxu0 0
  %1662 = vmatpush2.bf16.msra.mxu0 %v1584
  %1663 = vmatprep.subr.bf16.mxu0 0
  %1664 = vmatpush2.bf16.msra.mxu0 %v1583
  %1665 = vmatprep.subr.bf16.mxu0 0
  %1666 = vmatpush2.bf16.msra.mxu0 %v1582
  %1667 = vmatprep.subr.bf16.mxu0 0
  %1668 = vmatpush2.bf16.msra.mxu0 %v1581
  %1669 = vmatprep.subr.bf16.mxu0 0
  %1670 = vmatpush2.bf16.msra.mxu0 %v1580
  %1671 = vmatprep.subr.bf16.mxu0 0
  %1672 = vmatpush2.bf16.msra.mxu0 %v1579
  %1673 = vmatprep.subr.bf16.mxu0 0
  %1674 = vmatpush2.bf16.msra.mxu0 %v1578
  %1675 = vmatprep.subr.bf16.mxu0 0
  %1676 = vmatpush2.bf16.msra.mxu0 %v1577
  %1677 = vmatprep.mubr.bf16.mxu0 %v1325
  %1678 = vmatmul.mubr.bf16.gmra.mxu0 %v1322
  %v1679 = vpop.f32.mrf.mxu0
  %v1680 = vadd.f32 %v1423, %v1679
  %v1681 = vpop.f32.mrf.mxu0
  %v1682 = vpop.f32.mrf.mxu0
  %v1683 = vadd.f32 %v1423, %v1682
  %v1684 = vpop.f32.mrf.mxu0
  %1685 = vmatprep.mubr.bf16.mxu0 %v1336
  %1686 = vmatmul.mubr.bf16.gmra.mxu0 %v1331
  %v1687 = vpop.f32.mrf.mxu0
  %v1688 = vadd.f32 %v1423, %v1687
  %v1689 = vpop.f32.mrf.mxu0
  %v1690 = vpop.f32.mrf.mxu0
  %v1691 = vadd.f32 %v1423, %v1690
  %v1692 = vpop.f32.mrf.mxu0
  %1693 = vdwg.mxu0
  %1694 = vmatprep.subr.bf16.mxu0 0
  %1695 = vmatpush1.bf16.msra.mxu0 %v1592
  %1696 = vmatprep.subr.bf16.mxu0 0
  %1697 = vmatpush1.bf16.msra.mxu0 %v1591
  %1698 = vmatprep.subr.bf16.mxu0 0
  %1699 = vmatpush1.bf16.msra.mxu0 %v1590
  %1700 = vmatprep.subr.bf16.mxu0 0
  %1701 = vmatpush1.bf16.msra.mxu0 %v1589
  %1702 = vmatprep.subr.bf16.mxu0 0
  %1703 = vmatpush1.bf16.msra.mxu0 %v1588
  %1704 = vmatprep.subr.bf16.mxu0 0
  %1705 = vmatpush1.bf16.msra.mxu0 %v1587
  %1706 = vmatprep.subr.bf16.mxu0 0
  %1707 = vmatpush1.bf16.msra.mxu0 %v1586
  %1708 = vmatprep.subr.bf16.mxu0 0
  %1709 = vmatpush1.bf16.msra.mxu0 %v1585
  %1710 = vmatprep.subr.bf16.mxu0 0
  %1711 = vmatpush2.bf16.msra.mxu0 %v1600
  %1712 = vmatprep.subr.bf16.mxu0 0
  %1713 = vmatpush2.bf16.msra.mxu0 %v1599
  %1714 = vmatprep.subr.bf16.mxu0 0
  %1715 = vmatpush2.bf16.msra.mxu0 %v1598
  %1716 = vmatprep.subr.bf16.mxu0 0
  %1717 = vmatpush2.bf16.msra.mxu0 %v1597
  %1718 = vmatprep.subr.bf16.mxu0 0
  %1719 = vmatpush2.bf16.msra.mxu0 %v1596
  %1720 = vmatprep.subr.bf16.mxu0 0
  %1721 = vmatpush2.bf16.msra.mxu0 %v1595
  %1722 = vmatprep.subr.bf16.mxu0 0
  %1723 = vmatpush2.bf16.msra.mxu0 %v1594
  %1724 = vmatprep.subr.bf16.mxu0 0
  %1725 = vmatpush2.bf16.msra.mxu0 %v1593
  %1726 = vmatprep.mubr.bf16.mxu0 %v1331
  %1727 = vmatmul.mubr.bf16.gmra.mxu0 %v1328
  %v1728 = vpop.f32.mrf.mxu0
  %v1729 = vadd.f32 %v1680, %v1728
  %v1730 = vpop.f32.mrf.mxu0
  %v1731 = vpop.f32.mrf.mxu0
  %v1732 = vadd.f32 %v1683, %v1731
  %v1733 = vpop.f32.mrf.mxu0
  %1734 = vmatprep.mubr.bf16.mxu0 %v1342
  %1735 = vmatmul.mubr.bf16.gmra.mxu0 %v1339
  %v1736 = vpop.f32.mrf.mxu0
  %v1737 = vadd.f32 %v1688, %v1736
  %v1738 = vpop.f32.mrf.mxu0
  %v1739 = vpop.f32.mrf.mxu0
  %v1740 = vadd.f32 %v1691, %v1739
  %v1741 = vpop.f32.mrf.mxu0
  %1742 = vdwg.mxu0
  %1743 = vmatprep.subr.bf16.mxu0 0
  %1744 = vmatpush1.bf16.msra.mxu0 0
  %1745 = vmatprep.subr.bf16.mxu0 0
  %1746 = vmatpush1.bf16.msra.mxu0 0
  %1747 = vmatprep.subr.bf16.mxu0 0
  %1748 = vmatpush1.bf16.msra.mxu0 0
  %1749 = vmatprep.subr.bf16.mxu0 0
  %1750 = vmatpush1.bf16.msra.mxu0 0
  %1751 = vmatprep.subr.bf16.mxu0 0
  %1752 = vmatpush1.bf16.msra.mxu0 %v1604
  %1753 = vmatprep.subr.bf16.mxu0 0
  %1754 = vmatpush1.bf16.msra.mxu0 %v1603
  %1755 = vmatprep.subr.bf16.mxu0 0
  %1756 = vmatpush1.bf16.msra.mxu0 %v1602
  %1757 = vmatprep.subr.bf16.mxu0 0
  %1758 = vmatpush1.bf16.msra.mxu0 %v1601
  %1759 = vmatprep.subr.bf16.mxu0 0
  %1760 = vmatpush2.bf16.msra.mxu0 0
  %1761 = vmatprep.subr.bf16.mxu0 0
  %1762 = vmatpush2.bf16.msra.mxu0 0
  %1763 = vmatprep.subr.bf16.mxu0 0
  %1764 = vmatpush2.bf16.msra.mxu0 0
  %1765 = vmatprep.subr.bf16.mxu0 0
  %1766 = vmatpush2.bf16.msra.mxu0 0
  %1767 = vmatprep.subr.bf16.mxu0 0
  %1768 = vmatpush2.bf16.msra.mxu0 0
  %1769 = vmatprep.subr.bf16.mxu0 0
  %1770 = vmatpush2.bf16.msra.mxu0 0
  %1771 = vmatprep.subr.bf16.mxu0 0
  %1772 = vmatpush2.bf16.msra.mxu0 0
  %1773 = vmatprep.subr.bf16.mxu0 0
  %1774 = vmatpush2.bf16.msra.mxu0 0
  %1775 = vmatprep.mubr.bf16.mxu0 0
  %1776 = vmatmul.mubr.bf16.gmra.mxu0 %v1641
  %v1777 = vpop.f32.mrf.mxu0
  %v1778 = vadd.f32 %v1729, %v1777
  %v1779 = vpop.f32.mrf.mxu0
  %v1780 = vpop.f32.mrf.mxu0
  %v1781 = vadd.f32 %v1732, %v1780
  %v1782 = vpop.f32.mrf.mxu0
  %1783 = vmatprep.mubr.bf16.mxu0 0
  %1784 = vmatmul.mubr.bf16.gmra.mxu0 %v1643
  %v1785 = vpop.f32.mrf.mxu0
  %v1786 = vadd.f32 %v1737, %v1785
  %v1787 = vpop.f32.mrf.mxu0
  %v1788 = vpop.f32.mrf.mxu0
  %v1789 = vadd.f32 %v1740, %v1788
  %v1790 = vpop.f32.mrf.mxu0
  %1791 = vdwg.mxu0
  %v1792 = vmax.f32 %v1778, 0.0
  %v1793 = vmax.f32 %v1781, 0.0
  %v1794 = vmax.f32 %v1786, 0.0
  %v1795 = vmax.f32 %v1789, 0.0
  %v1796 = vpack.c.bf16 %v1793, %v1792
  %v1797 = vpack.c.bf16 %v1795, %v1794
  %v1800 = vunpack.c.l.b16 %v1796
  %v1801 = vunpack.c.h.b16 %v1796
  %v1802 = vunpack.c.l.b16 %v1797
  %v1803 = vunpack.c.h.b16 %v1797
  %v1804 = vpack.c.b16 %v1800, %v1800
  %v1805 = vpack.c.b16 %v1801, %v1801
  %v1806 = vpack.c.b16 %v1802, %v1802
  %v1807 = vpack.c.b16 %v1803, %v1803
  %v1812 = vld [vmem:[%s7] sm:$0xff]
  %v1813 = vld [vmem:[%s7 + $0x8] sm:$0xff]
  %v1814 = vld [vmem:[%s7 + $0x10] sm:$0xff]
  %v1815 = vld [vmem:[%s7 + $0x18] sm:$0xff]
  %v1816 = vld [vmem:[%s7 + $0x20] sm:$0xff]
  %v1817 = vld [vmem:[%s7 + $0x28] sm:$0xff]
  %v1818 = vld [vmem:[%s7 + $0x30] sm:$0xff]
  %v1819 = vld [vmem:[%s7 + $0x38] sm:$0xff]
  %v1820 = vld [vmem:[%s7 + $0x40] sm:$0xff]
  %v1821 = vld [vmem:[%s7 + $0x48] sm:$0xff]
  %v1822 = vld [vmem:[%s7 + $0x50] sm:$0xff]
  %v1823 = vld [vmem:[%s7 + $0x58] sm:$0xff]
  %v1824 = vld [vmem:[%s7 + $0x60] sm:$0xff]
  %v1825 = vld [vmem:[%s7 + $0x68] sm:$0xff]
  %v1826 = vld [vmem:[%s7 + $0x70] sm:$0xff]
  %v1827 = vld [vmem:[%s7 + $0x78] sm:$0xff]
  %v1828 = vld [vmem:[%s7 + $0x80] sm:$0xff]
  %v1829 = vld [vmem:[%s7 + $0x88] sm:$0xff]
  %v1830 = vld [vmem:[%s7 + $0x90] sm:$0xff]
  %v1831 = vld [vmem:[%s7 + $0x98] sm:$0xff]
  %v1832 = vld [vmem:[%s7 + $0xa0] sm:$0xff]
  %v1833 = vld [vmem:[%s7 + $0xa8] sm:$0xff]
  %v1834 = vld [vmem:[%s7 + $0xb0] sm:$0xff]
  %v1835 = vld [vmem:[%s7 + $0xb8] sm:$0xff]
  %v1836 = vld [vmem:[%s7 + $0xc0] sm:$0xff]
  %v1837 = vld [vmem:[%s7 + $0xc8] sm:$0xff]
  %v1838 = vld [vmem:[%s7 + $0xd0] sm:$0xff]
  %v1839 = vld [vmem:[%s7 + $0xd8] sm:$0xff]
  %v1840 = vld [vmem:[%s7 + $0xe0] sm:$0xff]
  %v1841 = vld [vmem:[%s7 + $0xe8] sm:$0xff]
  %v1842 = vld [vmem:[%s7 + $0xf0] sm:$0xff]
  %v1843 = vld [vmem:[%s7 + $0xf8] sm:$0xff]
  %v1844 = vld [vmem:[%s7 + $0x100] sm:$0xff]
  %v1845 = vld [vmem:[%s7 + $0x108] sm:$0xff]
  %v1846 = vld [vmem:[%s7 + $0x110] sm:$0xff]
  %v1847 = vld [vmem:[%s7 + $0x118] sm:$0xff]
  %v1848 = vld [vmem:[%s7 + $0x120] sm:$0xff]
  %v1849 = vld [vmem:[%s7 + $0x128] sm:$0xff]
  %v1850 = vld [vmem:[%s7 + $0x130] sm:$0xff]
  %v1851 = vld [vmem:[%s7 + $0x138] sm:$0xff]
  %v1852 = vld [vmem:[%s7 + $0x140] sm:$0xff]
  %v1853 = vld [vmem:[%s7 + $0x148] sm:$0xff]
  %v1854 = vld [vmem:[%s7 + $0x150] sm:$0xff]
  %v1855 = vld [vmem:[%s7 + $0x158] sm:$0xff]
  %v1856 = vld [vmem:[%s7 + $0x160] sm:$0xff]
  %v1857 = vld [vmem:[%s7 + $0x168] sm:$0xff]
  %v1858 = vld [vmem:[%s7 + $0x170] sm:$0xff]
  %v1859 = vld [vmem:[%s7 + $0x178] sm:$0xff]
  %v1860 = vld [vmem:[%s7 + $0x180] sm:$0xff]
  %v1861 = vld [vmem:[%s7 + $0x188] sm:$0xff]
  %v1862 = vld [vmem:[%s7 + $0x190] sm:$0xff]
  %v1863 = vld [vmem:[%s7 + $0x198] sm:$0xff]
  %v1864 = vld [vmem:[%s7 + $0x1a0] sm:$0xff]
  %v1865 = vld [vmem:[%s7 + $0x1a8] sm:$0xff]
  %v1866 = vld [vmem:[%s7 + $0x1b0] sm:$0xff]
  %v1867 = vld [vmem:[%s7 + $0x1b8] sm:$0xff]
  %v1868 = vld [vmem:[%s7 + $0x1c0] sm:$0xff]
  %v1869 = vld [vmem:[%s7 + $0x1c8] sm:$0xff]
  %v1870 = vld [vmem:[%s7 + $0x1d0] sm:$0xff]
  %v1871 = vld [vmem:[%s7 + $0x1d8] sm:$0xff]
  %v1872 = vld [vmem:[%s7 + $0x1e0] sm:$0xff]
  %v1873 = vld [vmem:[%s7 + $0x1e8] sm:$0xff]
  %v1874 = vld [vmem:[%s7 + $0x1f0] sm:$0xff]
  %v1875 = vld [vmem:[%s7 + $0x1f8] sm:$0xff]
  %v1876 = vld [vmem:[%s7 + $0x200] sm:$0xff]
  %v1877 = vld [vmem:[%s7 + $0x208] sm:$0xff]
  %v1878 = vld [vmem:[%s7 + $0x210] sm:$0xff]
  %v1879 = vld [vmem:[%s7 + $0x218] sm:$0xff]
  %v1880 = vld [vmem:[%s7 + $0x220] sm:$0xff]
  %v1881 = vld [vmem:[%s7 + $0x228] sm:$0xff]
  %v1882 = vld [vmem:[%s7 + $0x230] sm:$0xff]
  %v1883 = vld [vmem:[%s7 + $0x238] sm:$0xff]
  %v1884 = vld [vmem:[%s7 + $0x240] sm:$0xff]
  %v1885 = vld [vmem:[%s7 + $0x248] sm:$0xff]
  %v1886 = vld [vmem:[%s7 + $0x250] sm:$0xff]
  %v1887 = vld [vmem:[%s7 + $0x258] sm:$0xff]
  %v1888 = vld [vmem:[%s7 + $0x260] sm:$0xff]
  %v1889 = vld [vmem:[%s7 + $0x268] sm:$0xff]
  %v1890 = vld [vmem:[%s7 + $0x270] sm:$0xff]
  %v1891 = vld [vmem:[%s7 + $0x278] sm:$0xff]
  %v1892 = vld [vmem:[%s7 + $0x280] sm:$0xff]
  %v1893 = vld [vmem:[%s7 + $0x288] sm:$0xff]
  %v1894 = vld [vmem:[%s7 + $0x290] sm:$0xff]
  %v1895 = vld [vmem:[%s7 + $0x298] sm:$0xff]
  %v1896 = vld [vmem:[%s7 + $0x2a0] sm:$0xff]
  %v1897 = vld [vmem:[%s7 + $0x2a8] sm:$0xff]
  %v1898 = vld [vmem:[%s7 + $0x2b0] sm:$0xff]
  %v1899 = vld [vmem:[%s7 + $0x2b8] sm:$0xff]
  %v1900 = vld [vmem:[%s7 + $0x2c0] sm:$0xff]
  %v1901 = vld [vmem:[%s7 + $0x2c8] sm:$0xff]
  %v1902 = vld [vmem:[%s7 + $0x2d0] sm:$0xff]
  %v1903 = vld [vmem:[%s7 + $0x2d8] sm:$0xff]
  %v1904 = vld [vmem:[%s7 + $0x2e0] sm:$0xff]
  %v1905 = vld [vmem:[%s7 + $0x2e8] sm:$0xff]
  %v1906 = vld [vmem:[%s7 + $0x2f0] sm:$0xff]
  %v1907 = vld [vmem:[%s7 + $0x2f8] sm:$0xff]
  %v1908 = vld [vmem:[%s7 + $0x300] sm:$0xff]
  %v1909 = vld [vmem:[%s7 + $0x308] sm:$0xff]
  %v1910 = vld [vmem:[%s7 + $0x310] sm:$0xff]
  %v1911 = vld [vmem:[%s7 + $0x318] sm:$0xff]
  %v1912 = vld [vmem:[%s7 + $0x320] sm:$0xff]
  %v1913 = vld [vmem:[%s7 + $0x328] sm:$0xff]
  %v1914 = vld [vmem:[%s7 + $0x330] sm:$0xff]
  %v1915 = vld [vmem:[%s7 + $0x338] sm:$0xff]
  %v1916 = vld [vmem:[%s7 + $0x340] sm:$0xff]
  %v1917 = vld [vmem:[%s7 + $0x348] sm:$0xff]
  %v1918 = vld [vmem:[%s7 + $0x350] sm:$0xff]
  %v1919 = vld [vmem:[%s7 + $0x358] sm:$0xff]
  %v1920 = vld [vmem:[%s7 + $0x360] sm:$0xff]
  %v1921 = vld [vmem:[%s7 + $0x368] sm:$0xff]
  %v1922 = vld [vmem:[%s7 + $0x370] sm:$0xff]
  %v1923 = vld [vmem:[%s7 + $0x378] sm:$0xff]
  %v1924 = vld [vmem:[%s7 + $0x380] sm:$0xff]
  %v1925 = vld [vmem:[%s7 + $0x388] sm:$0xff]
  %v1926 = vld [vmem:[%s7 + $0x390] sm:$0xff]
  %v1927 = vld [vmem:[%s7 + $0x398] sm:$0xff]
  %v1928 = vld [vmem:[%s7 + $0x3a0] sm:$0xff]
  %v1929 = vld [vmem:[%s7 + $0x3a8] sm:$0xff]
  %v1930 = vld [vmem:[%s7 + $0x3b0] sm:$0xff]
  %v1931 = vld [vmem:[%s7 + $0x3b8] sm:$0xff]
  %v1932 = vld [vmem:[%s7 + $0x3c0] sm:$0xff]
  %v1933 = vld [vmem:[%s7 + $0x3c8] sm:$0xff]
  %v1934 = vld [vmem:[%s7 + $0x3d0] sm:$0xff]
  %v1935 = vld [vmem:[%s7 + $0x3d8] sm:$0xff]
  %v1936 = vld [vmem:[%s7 + $0x3e0] sm:$0xff]
  %v1937 = vld [vmem:[%s7 + $0x3e8] sm:$0xff]
  %v1938 = vld [vmem:[%s7 + $0x3f0] sm:$0xff]
  %v1939 = vld [vmem:[%s7 + $0x3f8] sm:$0xff]
  %v1940 = vld [vmem:[%s8] sm:$0xf]
  %v1942 = vlaneseq
  %v1943 = vshrl.u32 %v1942, 7
  %v1944 = vsub.s32 0, %v1943
  %v1945 = vrot.slane %v1940, %v1944
  %v1946 = vlaneseq
  %v1947 = vshrl.u32 %v1946, 7
  %v1948 = vsub.s32 1, %v1947
  %v1949 = vrot.slane %v1940, %v1948
  %v1950 = vlaneseq
  %v1951 = vshrl.u32 %v1950, 7
  %v1952 = vsub.s32 2, %v1951
  %v1953 = vrot.slane %v1940, %v1952
  %v1954 = vlaneseq
  %v1955 = vshrl.u32 %v1954, 7
  %v1956 = vsub.s32 3, %v1955
  %v1957 = vrot.slane %v1940, %v1956
  %v2090 = vunpack.c.l.b16 %v1812
  %v2091 = vunpack.c.h.b16 %v1812
  %v2092 = vunpack.c.l.b16 %v1813
  %v2093 = vunpack.c.h.b16 %v1813
  %v2094 = vunpack.c.l.b16 %v1814
  %v2095 = vunpack.c.h.b16 %v1814
  %v2096 = vunpack.c.l.b16 %v1815
  %v2097 = vunpack.c.h.b16 %v1815
  %v2098 = vunpack.c.l.b16 %v1816
  %v2099 = vunpack.c.h.b16 %v1816
  %v2100 = vunpack.c.l.b16 %v1817
  %v2101 = vunpack.c.h.b16 %v1817
  %v2102 = vunpack.c.l.b16 %v1818
  %v2103 = vunpack.c.h.b16 %v1818
  %v2104 = vunpack.c.l.b16 %v1819
  %v2105 = vunpack.c.h.b16 %v1819
  %v2106 = vunpack.c.l.b16 %v1820
  %v2107 = vunpack.c.h.b16 %v1820
  %v2108 = vunpack.c.l.b16 %v1821
  %v2109 = vunpack.c.h.b16 %v1821
  %v2110 = vunpack.c.l.b16 %v1822
  %v2111 = vunpack.c.h.b16 %v1822
  %v2112 = vunpack.c.l.b16 %v1823
  %v2113 = vunpack.c.h.b16 %v1823
  %v2114 = vunpack.c.l.b16 %v1824
  %v2115 = vunpack.c.h.b16 %v1824
  %v2116 = vunpack.c.l.b16 %v1825
  %v2117 = vunpack.c.h.b16 %v1825
  %v2118 = vunpack.c.l.b16 %v1826
  %v2119 = vunpack.c.h.b16 %v1826
  %v2120 = vunpack.c.l.b16 %v1827
  %v2121 = vunpack.c.h.b16 %v1827
  %v2122 = vunpack.c.l.b16 %v1828
  %v2123 = vunpack.c.h.b16 %v1828
  %v2124 = vunpack.c.l.b16 %v1829
  %v2125 = vunpack.c.h.b16 %v1829
  %v2126 = vunpack.c.l.b16 %v1830
  %v2127 = vunpack.c.h.b16 %v1830
  %v2128 = vunpack.c.l.b16 %v1831
  %v2129 = vunpack.c.h.b16 %v1831
  %v2130 = vunpack.c.l.b16 %v1832
  %v2131 = vunpack.c.h.b16 %v1832
  %v2132 = vunpack.c.l.b16 %v1833
  %v2133 = vunpack.c.h.b16 %v1833
  %v2134 = vunpack.c.l.b16 %v1834
  %v2135 = vunpack.c.h.b16 %v1834
  %v2136 = vunpack.c.l.b16 %v1835
  %v2137 = vunpack.c.h.b16 %v1835
  %v2138 = vunpack.c.l.b16 %v1836
  %v2139 = vunpack.c.h.b16 %v1836
  %v2140 = vunpack.c.l.b16 %v1837
  %v2141 = vunpack.c.h.b16 %v1837
  %v2142 = vunpack.c.l.b16 %v1838
  %v2143 = vunpack.c.h.b16 %v1838
  %v2144 = vunpack.c.l.b16 %v1839
  %v2145 = vunpack.c.h.b16 %v1839
  %v2146 = vunpack.c.l.b16 %v1840
  %v2147 = vunpack.c.h.b16 %v1840
  %v2148 = vunpack.c.l.b16 %v1841
  %v2149 = vunpack.c.h.b16 %v1841
  %v2150 = vunpack.c.l.b16 %v1842
  %v2151 = vunpack.c.h.b16 %v1842
  %v2152 = vunpack.c.l.b16 %v1843
  %v2153 = vunpack.c.h.b16 %v1843
  %v2154 = vunpack.c.l.b16 %v1844
  %v2155 = vunpack.c.h.b16 %v1844
  %v2156 = vunpack.c.l.b16 %v1845
  %v2157 = vunpack.c.h.b16 %v1845
  %v2158 = vunpack.c.l.b16 %v1846
  %v2159 = vunpack.c.h.b16 %v1846
  %v2160 = vunpack.c.l.b16 %v1847
  %v2161 = vunpack.c.h.b16 %v1847
  %v2162 = vunpack.c.l.b16 %v1848
  %v2163 = vunpack.c.h.b16 %v1848
  %v2164 = vunpack.c.l.b16 %v1849
  %v2165 = vunpack.c.h.b16 %v1849
  %v2166 = vunpack.c.l.b16 %v1850
  %v2167 = vunpack.c.h.b16 %v1850
  %v2168 = vunpack.c.l.b16 %v1851
  %v2169 = vunpack.c.h.b16 %v1851
  %v2170 = vunpack.c.l.b16 %v1852
  %v2171 = vunpack.c.h.b16 %v1852
  %v2172 = vunpack.c.l.b16 %v1853
  %v2173 = vunpack.c.h.b16 %v1853
  %v2174 = vunpack.c.l.b16 %v1854
  %v2175 = vunpack.c.h.b16 %v1854
  %v2176 = vunpack.c.l.b16 %v1855
  %v2177 = vunpack.c.h.b16 %v1855
  %v2178 = vunpack.c.l.b16 %v1856
  %v2179 = vunpack.c.h.b16 %v1856
  %v2180 = vunpack.c.l.b16 %v1857
  %v2181 = vunpack.c.h.b16 %v1857
  %v2182 = vunpack.c.l.b16 %v1858
  %v2183 = vunpack.c.h.b16 %v1858
  %v2184 = vunpack.c.l.b16 %v1859
  %v2185 = vunpack.c.h.b16 %v1859
  %v2186 = vunpack.c.l.b16 %v1860
  %v2187 = vunpack.c.h.b16 %v1860
  %v2188 = vunpack.c.l.b16 %v1861
  %v2189 = vunpack.c.h.b16 %v1861
  %v2190 = vunpack.c.l.b16 %v1862
  %v2191 = vunpack.c.h.b16 %v1862
  %v2192 = vunpack.c.l.b16 %v1863
  %v2193 = vunpack.c.h.b16 %v1863
  %v2194 = vunpack.c.l.b16 %v1864
  %v2195 = vunpack.c.h.b16 %v1864
  %v2196 = vunpack.c.l.b16 %v1865
  %v2197 = vunpack.c.h.b16 %v1865
  %v2198 = vunpack.c.l.b16 %v1866
  %v2199 = vunpack.c.h.b16 %v1866
  %v2200 = vunpack.c.l.b16 %v1867
  %v2201 = vunpack.c.h.b16 %v1867
  %v2202 = vunpack.c.l.b16 %v1868
  %v2203 = vunpack.c.h.b16 %v1868
  %v2204 = vunpack.c.l.b16 %v1869
  %v2205 = vunpack.c.h.b16 %v1869
  %v2206 = vunpack.c.l.b16 %v1870
  %v2207 = vunpack.c.h.b16 %v1870
  %v2208 = vunpack.c.l.b16 %v1871
  %v2209 = vunpack.c.h.b16 %v1871
  %v2210 = vunpack.c.l.b16 %v1872
  %v2211 = vunpack.c.h.b16 %v1872
  %v2212 = vunpack.c.l.b16 %v1873
  %v2213 = vunpack.c.h.b16 %v1873
  %v2214 = vunpack.c.l.b16 %v1874
  %v2215 = vunpack.c.h.b16 %v1874
  %v2216 = vunpack.c.l.b16 %v1875
  %v2217 = vunpack.c.h.b16 %v1875
  %v2218 = vunpack.c.l.b16 %v1876
  %v2219 = vunpack.c.h.b16 %v1876
  %v2220 = vunpack.c.l.b16 %v1877
  %v2221 = vunpack.c.h.b16 %v1877
  %v2222 = vunpack.c.l.b16 %v1878
  %v2223 = vunpack.c.h.b16 %v1878
  %v2224 = vunpack.c.l.b16 %v1879
  %v2225 = vunpack.c.h.b16 %v1879
  %v2226 = vunpack.c.l.b16 %v1880
  %v2227 = vunpack.c.h.b16 %v1880
  %v2228 = vunpack.c.l.b16 %v1881
  %v2229 = vunpack.c.h.b16 %v1881
  %v2230 = vunpack.c.l.b16 %v1882
  %v2231 = vunpack.c.h.b16 %v1882
  %v2232 = vunpack.c.l.b16 %v1883
  %v2233 = vunpack.c.h.b16 %v1883
  %v2234 = vunpack.c.l.b16 %v1884
  %v2235 = vunpack.c.h.b16 %v1884
  %v2236 = vunpack.c.l.b16 %v1885
  %v2237 = vunpack.c.h.b16 %v1885
  %v2238 = vunpack.c.l.b16 %v1886
  %v2239 = vunpack.c.h.b16 %v1886
  %v2240 = vunpack.c.l.b16 %v1887
  %v2241 = vunpack.c.h.b16 %v1887
  %v2242 = vunpack.c.l.b16 %v1888
  %v2243 = vunpack.c.h.b16 %v1888
  %v2244 = vunpack.c.l.b16 %v1889
  %v2245 = vunpack.c.h.b16 %v1889
  %v2246 = vunpack.c.l.b16 %v1890
  %v2247 = vunpack.c.h.b16 %v1890
  %v2248 = vunpack.c.l.b16 %v1891
  %v2249 = vunpack.c.h.b16 %v1891
  %v2250 = vunpack.c.l.b16 %v1892
  %v2251 = vunpack.c.h.b16 %v1892
  %v2252 = vunpack.c.l.b16 %v1893
  %v2253 = vunpack.c.h.b16 %v1893
  %v2254 = vunpack.c.l.b16 %v1894
  %v2255 = vunpack.c.h.b16 %v1894
  %v2256 = vunpack.c.l.b16 %v1895
  %v2257 = vunpack.c.h.b16 %v1895
  %v2258 = vunpack.c.l.b16 %v1896
  %v2259 = vunpack.c.h.b16 %v1896
  %v2260 = vunpack.c.l.b16 %v1897
  %v2261 = vunpack.c.h.b16 %v1897
  %v2262 = vunpack.c.l.b16 %v1898
  %v2263 = vunpack.c.h.b16 %v1898
  %v2264 = vunpack.c.l.b16 %v1899
  %v2265 = vunpack.c.h.b16 %v1899
  %v2266 = vunpack.c.l.b16 %v1900
  %v2267 = vunpack.c.h.b16 %v1900
  %v2268 = vunpack.c.l.b16 %v1901
  %v2269 = vunpack.c.h.b16 %v1901
  %v2270 = vunpack.c.l.b16 %v1902
  %v2271 = vunpack.c.h.b16 %v1902
  %v2272 = vunpack.c.l.b16 %v1903
  %v2273 = vunpack.c.h.b16 %v1903
  %v2274 = vunpack.c.l.b16 %v1904
  %v2275 = vunpack.c.h.b16 %v1904
  %v2276 = vunpack.c.l.b16 %v1905
  %v2277 = vunpack.c.h.b16 %v1905
  %v2278 = vunpack.c.l.b16 %v1906
  %v2279 = vunpack.c.h.b16 %v1906
  %v2280 = vunpack.c.l.b16 %v1907
  %v2281 = vunpack.c.h.b16 %v1907
  %v2282 = vunpack.c.l.b16 %v1908
  %v2283 = vunpack.c.h.b16 %v1908
  %v2284 = vunpack.c.l.b16 %v1909
  %v2285 = vunpack.c.h.b16 %v1909
  %v2286 = vunpack.c.l.b16 %v1910
  %v2287 = vunpack.c.h.b16 %v1910
  %v2288 = vunpack.c.l.b16 %v1911
  %v2289 = vunpack.c.h.b16 %v1911
  %v2290 = vunpack.c.l.b16 %v1912
  %v2291 = vunpack.c.h.b16 %v1912
  %v2292 = vunpack.c.l.b16 %v1913
  %v2293 = vunpack.c.h.b16 %v1913
  %v2294 = vunpack.c.l.b16 %v1914
  %v2295 = vunpack.c.h.b16 %v1914
  %v2296 = vunpack.c.l.b16 %v1915
  %v2297 = vunpack.c.h.b16 %v1915
  %v2298 = vunpack.c.l.b16 %v1916
  %v2299 = vunpack.c.h.b16 %v1916
  %v2300 = vunpack.c.l.b16 %v1917
  %v2301 = vunpack.c.h.b16 %v1917
  %v2302 = vunpack.c.l.b16 %v1918
  %v2303 = vunpack.c.h.b16 %v1918
  %v2304 = vunpack.c.l.b16 %v1919
  %v2305 = vunpack.c.h.b16 %v1919
  %v2306 = vunpack.c.l.b16 %v1920
  %v2307 = vunpack.c.h.b16 %v1920
  %v2308 = vunpack.c.l.b16 %v1921
  %v2309 = vunpack.c.h.b16 %v1921
  %v2310 = vunpack.c.l.b16 %v1922
  %v2311 = vunpack.c.h.b16 %v1922
  %v2312 = vunpack.c.l.b16 %v1923
  %v2313 = vunpack.c.h.b16 %v1923
  %v2314 = vunpack.c.l.b16 %v1924
  %v2315 = vunpack.c.h.b16 %v1924
  %v2316 = vunpack.c.l.b16 %v1925
  %v2317 = vunpack.c.h.b16 %v1925
  %v2318 = vunpack.c.l.b16 %v1926
  %v2319 = vunpack.c.h.b16 %v1926
  %v2320 = vunpack.c.l.b16 %v1927
  %v2321 = vunpack.c.h.b16 %v1927
  %v2322 = vunpack.c.l.b16 %v1928
  %v2323 = vunpack.c.h.b16 %v1928
  %v2324 = vunpack.c.l.b16 %v1929
  %v2325 = vunpack.c.h.b16 %v1929
  %v2326 = vunpack.c.l.b16 %v1930
  %v2327 = vunpack.c.h.b16 %v1930
  %v2328 = vunpack.c.l.b16 %v1931
  %v2329 = vunpack.c.h.b16 %v1931
  %v2330 = vunpack.c.l.b16 %v1932
  %v2331 = vunpack.c.h.b16 %v1932
  %v2332 = vunpack.c.l.b16 %v1933
  %v2333 = vunpack.c.h.b16 %v1933
  %v2334 = vunpack.c.l.b16 %v1934
  %v2335 = vunpack.c.h.b16 %v1934
  %v2336 = vunpack.c.l.b16 %v1935
  %v2337 = vunpack.c.h.b16 %v1935
  %v2338 = vunpack.c.l.b16 %v1936
  %v2339 = vunpack.c.h.b16 %v1936
  %v2340 = vunpack.c.l.b16 %v1937
  %v2341 = vunpack.c.h.b16 %v1937
  %v2342 = vunpack.c.l.b16 %v1938
  %v2343 = vunpack.c.h.b16 %v1938
  %v2344 = vunpack.c.l.b16 %v1939
  %v2345 = vunpack.c.h.b16 %v1939
  %v2346 = vpack.c.b16 %v2094, %v2090
  %v2347 = vpack.c.b16 %v2095, %v2091
  %v2348 = vpack.c.b16 %v2096, %v2092
  %v2349 = vpack.c.b16 %v2097, %v2093
  %v2350 = vpack.c.b16 %v2102, %v2098
  %v2351 = vpack.c.b16 %v2103, %v2099
  %v2352 = vpack.c.b16 %v2104, %v2100
  %v2353 = vpack.c.b16 %v2105, %v2101
  %v2354 = vpack.c.b16 %v2110, %v2106
  %v2355 = vpack.c.b16 %v2111, %v2107
  %v2356 = vpack.c.b16 %v2112, %v2108
  %v2357 = vpack.c.b16 %v2113, %v2109
  %v2358 = vpack.c.b16 %v2118, %v2114
  %v2359 = vpack.c.b16 %v2119, %v2115
  %v2360 = vpack.c.b16 %v2120, %v2116
  %v2361 = vpack.c.b16 %v2121, %v2117
  %v2362 = vpack.c.b16 %v2126, %v2122
  %v2363 = vpack.c.b16 %v2127, %v2123
  %v2364 = vpack.c.b16 %v2128, %v2124
  %v2365 = vpack.c.b16 %v2129, %v2125
  %v2366 = vpack.c.b16 %v2134, %v2130
  %v2367 = vpack.c.b16 %v2135, %v2131
  %v2368 = vpack.c.b16 %v2136, %v2132
  %v2369 = vpack.c.b16 %v2137, %v2133
  %v2370 = vpack.c.b16 %v2142, %v2138
  %v2371 = vpack.c.b16 %v2143, %v2139
  %v2372 = vpack.c.b16 %v2144, %v2140
  %v2373 = vpack.c.b16 %v2145, %v2141
  %v2374 = vpack.c.b16 %v2150, %v2146
  %v2375 = vpack.c.b16 %v2151, %v2147
  %v2376 = vpack.c.b16 %v2152, %v2148
  %v2377 = vpack.c.b16 %v2153, %v2149
  %v2378 = vpack.c.b16 %v2158, %v2154
  %v2379 = vpack.c.b16 %v2159, %v2155
  %v2380 = vpack.c.b16 %v2160, %v2156
  %v2381 = vpack.c.b16 %v2161, %v2157
  %v2382 = vpack.c.b16 %v2166, %v2162
  %v2383 = vpack.c.b16 %v2167, %v2163
  %v2384 = vpack.c.b16 %v2168, %v2164
  %v2385 = vpack.c.b16 %v2169, %v2165
  %v2386 = vpack.c.b16 %v2174, %v2170
  %v2387 = vpack.c.b16 %v2175, %v2171
  %v2388 = vpack.c.b16 %v2176, %v2172
  %v2389 = vpack.c.b16 %v2177, %v2173
  %v2390 = vpack.c.b16 %v2182, %v2178
  %v2391 = vpack.c.b16 %v2183, %v2179
  %v2392 = vpack.c.b16 %v2184, %v2180
  %v2393 = vpack.c.b16 %v2185, %v2181
  %v2394 = vpack.c.b16 %v2190, %v2186
  %v2395 = vpack.c.b16 %v2191, %v2187
  %v2396 = vpack.c.b16 %v2192, %v2188
  %v2397 = vpack.c.b16 %v2193, %v2189
  %v2398 = vpack.c.b16 %v2198, %v2194
  %v2399 = vpack.c.b16 %v2199, %v2195
  %v2400 = vpack.c.b16 %v2200, %v2196
  %v2401 = vpack.c.b16 %v2201, %v2197
  %v2402 = vpack.c.b16 %v2206, %v2202
  %v2403 = vpack.c.b16 %v2207, %v2203
  %v2404 = vpack.c.b16 %v2208, %v2204
  %v2405 = vpack.c.b16 %v2209, %v2205
  %v2406 = vpack.c.b16 %v2214, %v2210
  %v2407 = vpack.c.b16 %v2215, %v2211
  %v2408 = vpack.c.b16 %v2216, %v2212
  %v2409 = vpack.c.b16 %v2217, %v2213
  %v2410 = vpack.c.b16 %v2222, %v2218
  %v2411 = vpack.c.b16 %v2223, %v2219
  %v2412 = vpack.c.b16 %v2224, %v2220
  %v2413 = vpack.c.b16 %v2225, %v2221
  %v2414 = vpack.c.b16 %v2230, %v2226
  %v2415 = vpack.c.b16 %v2231, %v2227
  %v2416 = vpack.c.b16 %v2232, %v2228
  %v2417 = vpack.c.b16 %v2233, %v2229
  %v2418 = vpack.c.b16 %v2238, %v2234
  %v2419 = vpack.c.b16 %v2239, %v2235
  %v2420 = vpack.c.b16 %v2240, %v2236
  %v2421 = vpack.c.b16 %v2241, %v2237
  %v2422 = vpack.c.b16 %v2246, %v2242
  %v2423 = vpack.c.b16 %v2247, %v2243
  %v2424 = vpack.c.b16 %v2248, %v2244
  %v2425 = vpack.c.b16 %v2249, %v2245
  %v2426 = vpack.c.b16 %v2254, %v2250
  %v2427 = vpack.c.b16 %v2255, %v2251
  %v2428 = vpack.c.b16 %v2256, %v2252
  %v2429 = vpack.c.b16 %v2257, %v2253
  %v2430 = vpack.c.b16 %v2262, %v2258
  %v2431 = vpack.c.b16 %v2263, %v2259
  %v2432 = vpack.c.b16 %v2264, %v2260
  %v2433 = vpack.c.b16 %v2265, %v2261
  %v2434 = vpack.c.b16 %v2270, %v2266
  %v2435 = vpack.c.b16 %v2271, %v2267
  %v2436 = vpack.c.b16 %v2272, %v2268
  %v2437 = vpack.c.b16 %v2273, %v2269
  %v2438 = vpack.c.b16 %v2278, %v2274
  %v2439 = vpack.c.b16 %v2279, %v2275
  %v2440 = vpack.c.b16 %v2280, %v2276
  %v2441 = vpack.c.b16 %v2281, %v2277
  %v2442 = vpack.c.b16 %v2286, %v2282
  %v2443 = vpack.c.b16 %v2287, %v2283
  %v2444 = vpack.c.b16 %v2288, %v2284
  %v2445 = vpack.c.b16 %v2289, %v2285
  %v2446 = vpack.c.b16 %v2294, %v2290
  %v2447 = vpack.c.b16 %v2295, %v2291
  %v2448 = vpack.c.b16 %v2296, %v2292
  %v2449 = vpack.c.b16 %v2297, %v2293
  %v2450 = vpack.c.b16 %v2302, %v2298
  %v2451 = vpack.c.b16 %v2303, %v2299
  %v2452 = vpack.c.b16 %v2304, %v2300
  %v2453 = vpack.c.b16 %v2305, %v2301
  %v2454 = vpack.c.b16 %v2310, %v2306
  %v2455 = vpack.c.b16 %v2311, %v2307
  %v2456 = vpack.c.b16 %v2312, %v2308
  %v2457 = vpack.c.b16 %v2313, %v2309
  %v2458 = vpack.c.b16 %v2318, %v2314
  %v2459 = vpack.c.b16 %v2319, %v2315
  %v2460 = vpack.c.b16 %v2320, %v2316
  %v2461 = vpack.c.b16 %v2321, %v2317
  %v2462 = vpack.c.b16 %v2326, %v2322
  %v2463 = vpack.c.b16 %v2327, %v2323
  %v2464 = vpack.c.b16 %v2328, %v2324
  %v2465 = vpack.c.b16 %v2329, %v2325
  %v2466 = vpack.c.b16 %v2334, %v2330
  %v2467 = vpack.c.b16 %v2335, %v2331
  %v2468 = vpack.c.b16 %v2336, %v2332
  %v2469 = vpack.c.b16 %v2337, %v2333
  %v2470 = vpack.c.b16 %v2342, %v2338
  %v2471 = vpack.c.b16 %v2343, %v2339
  %v2472 = vpack.c.b16 %v2344, %v2340
  %v2473 = vpack.c.b16 %v2345, %v2341
  %2602 = vmatprep.subr.bf16.mxu0 %v2375
  %2603 = vmatpush1.bf16.msra.mxu0 %v2374
  %2604 = vmatprep.subr.bf16.mxu0 %v2371
  %2605 = vmatpush1.bf16.msra.mxu0 %v2370
  %2606 = vmatprep.subr.bf16.mxu0 %v2367
  %2607 = vmatpush1.bf16.msra.mxu0 %v2366
  %2608 = vmatprep.subr.bf16.mxu0 %v2363
  %2609 = vmatpush1.bf16.msra.mxu0 %v2362
  %2610 = vmatprep.subr.bf16.mxu0 %v2359
  %2611 = vmatpush1.bf16.msra.mxu0 %v2358
  %2612 = vmatprep.subr.bf16.mxu0 %v2355
  %2613 = vmatpush1.bf16.msra.mxu0 %v2354
  %2614 = vmatprep.subr.bf16.mxu0 %v2351
  %2615 = vmatpush1.bf16.msra.mxu0 %v2350
  %2616 = vmatprep.subr.bf16.mxu0 %v2347
  %2617 = vmatpush1.bf16.msra.mxu0 %v2346
  %2618 = vmatprep.subr.bf16.mxu0 %v2407
  %2619 = vmatpush2.bf16.msra.mxu0 %v2406
  %2620 = vmatprep.subr.bf16.mxu0 %v2403
  %2621 = vmatpush2.bf16.msra.mxu0 %v2402
  %2622 = vmatprep.subr.bf16.mxu0 %v2399
  %2623 = vmatpush2.bf16.msra.mxu0 %v2398
  %2624 = vmatprep.subr.bf16.mxu0 %v2395
  %2625 = vmatpush2.bf16.msra.mxu0 %v2394
  %2626 = vmatprep.subr.bf16.mxu0 %v2391
  %2627 = vmatpush2.bf16.msra.mxu0 %v2390
  %2628 = vmatprep.subr.bf16.mxu0 %v2387
  %2629 = vmatpush2.bf16.msra.mxu0 %v2386
  %2630 = vmatprep.subr.bf16.mxu0 %v2383
  %2631 = vmatpush2.bf16.msra.mxu0 %v2382
  %2632 = vmatprep.subr.bf16.mxu0 %v2379
  %2633 = vmatpush2.bf16.msra.mxu0 %v2378
  %2634 = vmatprep.mubr.bf16.mxu0 %v1805
  %2635 = vmatmul.mubr.bf16.gmra.mxu0 %v1804
  %v2636 = vpop.f32.mrf.mxu0
  %v2637 = vadd.f32 %v1945, %v2636
  %v2638 = vpop.f32.mrf.mxu0
  %v2639 = vadd.f32 %v1949, %v2638
  %v2640 = vpop.f32.mrf.mxu0
  %v2641 = vpop.f32.mrf.mxu0
  %2642 = vdwg.mxu0
  %2643 = vmatprep.subr.bf16.mxu0 %v2439
  %2644 = vmatpush1.bf16.msra.mxu0 %v2438
  %2645 = vmatprep.subr.bf16.mxu0 %v2435
  %2646 = vmatpush1.bf16.msra.mxu0 %v2434
  %2647 = vmatprep.subr.bf16.mxu0 %v2431
  %2648 = vmatpush1.bf16.msra.mxu0 %v2430
  %2649 = vmatprep.subr.bf16.mxu0 %v2427
  %2650 = vmatpush1.bf16.msra.mxu0 %v2426
  %2651 = vmatprep.subr.bf16.mxu0 %v2423
  %2652 = vmatpush1.bf16.msra.mxu0 %v2422
  %2653 = vmatprep.subr.bf16.mxu0 %v2419
  %2654 = vmatpush1.bf16.msra.mxu0 %v2418
  %2655 = vmatprep.subr.bf16.mxu0 %v2415
  %2656 = vmatpush1.bf16.msra.mxu0 %v2414
  %2657 = vmatprep.subr.bf16.mxu0 %v2411
  %2658 = vmatpush1.bf16.msra.mxu0 %v2410
  %2659 = vmatprep.subr.bf16.mxu0 %v2471
  %2660 = vmatpush2.bf16.msra.mxu0 %v2470
  %2661 = vmatprep.subr.bf16.mxu0 %v2467
  %2662 = vmatpush2.bf16.msra.mxu0 %v2466
  %2663 = vmatprep.subr.bf16.mxu0 %v2463
  %2664 = vmatpush2.bf16.msra.mxu0 %v2462
  %2665 = vmatprep.subr.bf16.mxu0 %v2459
  %2666 = vmatpush2.bf16.msra.mxu0 %v2458
  %2667 = vmatprep.subr.bf16.mxu0 %v2455
  %2668 = vmatpush2.bf16.msra.mxu0 %v2454
  %2669 = vmatprep.subr.bf16.mxu0 %v2451
  %2670 = vmatpush2.bf16.msra.mxu0 %v2450
  %2671 = vmatprep.subr.bf16.mxu0 %v2447
  %2672 = vmatpush2.bf16.msra.mxu0 %v2446
  %2673 = vmatprep.subr.bf16.mxu0 %v2443
  %2674 = vmatpush2.bf16.msra.mxu0 %v2442
  %2675 = vmatprep.mubr.bf16.mxu0 %v1807
  %2676 = vmatmul.mubr.bf16.gmra.mxu0 %v1806
  %v2677 = vpop.f32.mrf.mxu0
  %v2678 = vadd.f32 %v2637, %v2677
  %v2679 = vpop.f32.mrf.mxu0
  %v2680 = vadd.f32 %v2639, %v2679
  %v2681 = vpop.f32.mrf.mxu0
  %v2682 = vpop.f32.mrf.mxu0
  %2683 = vdwg.mxu0
  %2684 = vmatprep.subr.bf16.mxu0 %v2377
  %2685 = vmatpush1.bf16.msra.mxu0 %v2376
  %2686 = vmatprep.subr.bf16.mxu0 %v2373
  %2687 = vmatpush1.bf16.msra.mxu0 %v2372
  %2688 = vmatprep.subr.bf16.mxu0 %v2369
  %2689 = vmatpush1.bf16.msra.mxu0 %v2368
  %2690 = vmatprep.subr.bf16.mxu0 %v2365
  %2691 = vmatpush1.bf16.msra.mxu0 %v2364
  %2692 = vmatprep.subr.bf16.mxu0 %v2361
  %2693 = vmatpush1.bf16.msra.mxu0 %v2360
  %2694 = vmatprep.subr.bf16.mxu0 %v2357
  %2695 = vmatpush1.bf16.msra.mxu0 %v2356
  %2696 = vmatprep.subr.bf16.mxu0 %v2353
  %2697 = vmatpush1.bf16.msra.mxu0 %v2352
  %2698 = vmatprep.subr.bf16.mxu0 %v2349
  %2699 = vmatpush1.bf16.msra.mxu0 %v2348
  %2700 = vmatprep.subr.bf16.mxu0 %v2409
  %2701 = vmatpush2.bf16.msra.mxu0 %v2408
  %2702 = vmatprep.subr.bf16.mxu0 %v2405
  %2703 = vmatpush2.bf16.msra.mxu0 %v2404
  %2704 = vmatprep.subr.bf16.mxu0 %v2401
  %2705 = vmatpush2.bf16.msra.mxu0 %v2400
  %2706 = vmatprep.subr.bf16.mxu0 %v2397
  %2707 = vmatpush2.bf16.msra.mxu0 %v2396
  %2708 = vmatprep.subr.bf16.mxu0 %v2393
  %2709 = vmatpush2.bf16.msra.mxu0 %v2392
  %2710 = vmatprep.subr.bf16.mxu0 %v2389
  %2711 = vmatpush2.bf16.msra.mxu0 %v2388
  %2712 = vmatprep.subr.bf16.mxu0 %v2385
  %2713 = vmatpush2.bf16.msra.mxu0 %v2384
  %2714 = vmatprep.subr.bf16.mxu0 %v2381
  %2715 = vmatpush2.bf16.msra.mxu0 %v2380
  %2716 = vmatprep.mubr.bf16.mxu0 %v1805
  %2717 = vmatmul.mubr.bf16.gmra.mxu0 %v1804
  %v2718 = vpop.f32.mrf.mxu0
  %v2719 = vadd.f32 %v1953, %v2718
  %v2720 = vpop.f32.mrf.mxu0
  %v2721 = vadd.f32 %v1957, %v2720
  %v2722 = vpop.f32.mrf.mxu0
  %v2723 = vpop.f32.mrf.mxu0
  %2724 = vdwg.mxu0
  %2725 = vmatprep.subr.bf16.mxu0 %v2441
  %2726 = vmatpush1.bf16.msra.mxu0 %v2440
  %2727 = vmatprep.subr.bf16.mxu0 %v2437
  %2728 = vmatpush1.bf16.msra.mxu0 %v2436
  %2729 = vmatprep.subr.bf16.mxu0 %v2433
  %2730 = vmatpush1.bf16.msra.mxu0 %v2432
  %2731 = vmatprep.subr.bf16.mxu0 %v2429
  %2732 = vmatpush1.bf16.msra.mxu0 %v2428
  %2733 = vmatprep.subr.bf16.mxu0 %v2425
  %2734 = vmatpush1.bf16.msra.mxu0 %v2424
  %2735 = vmatprep.subr.bf16.mxu0 %v2421
  %2736 = vmatpush1.bf16.msra.mxu0 %v2420
  %2737 = vmatprep.subr.bf16.mxu0 %v2417
  %2738 = vmatpush1.bf16.msra.mxu0 %v2416
  %2739 = vmatprep.subr.bf16.mxu0 %v2413
  %2740 = vmatpush1.bf16.msra.mxu0 %v2412
  %2741 = vmatprep.subr.bf16.mxu0 %v2473
  %2742 = vmatpush2.bf16.msra.mxu0 %v2472
  %2743 = vmatprep.subr.bf16.mxu0 %v2469
  %2744 = vmatpush2.bf16.msra.mxu0 %v2468
  %2745 = vmatprep.subr.bf16.mxu0 %v2465
  %2746 = vmatpush2.bf16.msra.mxu0 %v2464
  %2747 = vmatprep.subr.bf16.mxu0 %v2461
  %2748 = vmatpush2.bf16.msra.mxu0 %v2460
  %2749 = vmatprep.subr.bf16.mxu0 %v2457
  %2750 = vmatpush2.bf16.msra.mxu0 %v2456
  %2751 = vmatprep.subr.bf16.mxu0 %v2453
  %2752 = vmatpush2.bf16.msra.mxu0 %v2452
  %2753 = vmatprep.subr.bf16.mxu0 %v2449
  %2754 = vmatpush2.bf16.msra.mxu0 %v2448
  %2755 = vmatprep.subr.bf16.mxu0 %v2445
  %2756 = vmatpush2.bf16.msra.mxu0 %v2444
  %2757 = vmatprep.mubr.bf16.mxu0 %v1807
  %2758 = vmatmul.mubr.bf16.gmra.mxu0 %v1806
  %v2759 = vpop.f32.mrf.mxu0
  %v2760 = vadd.f32 %v2719, %v2759
  %v2761 = vpop.f32.mrf.mxu0
  %v2762 = vadd.f32 %v2721, %v2761
  %v2763 = vpop.f32.mrf.mxu0
  %v2764 = vpop.f32.mrf.mxu0
  %2765 = vdwg.mxu0
  %v2766 = vmax.f32 %v2678, 0.0
  %v2767 = vmax.f32 %v2680, 0.0
  %v2768 = vmax.f32 %v2760, 0.0
  %v2769 = vmax.f32 %v2762, 0.0
  %v2770 = vpack.c.bf16 %v2766, %v2766
  %v2771 = vpack.c.bf16 %v2767, %v2767
  %v2772 = vpack.c.bf16 %v2768, %v2768
  %v2773 = vpack.c.bf16 %v2769, %v2769
  %v2774 = vld [vmem:[%s9] sm:$0xf]
  %v2775 = vld [vmem:[%s9 + $0x4] sm:$0xf]
  %v2776 = vld [vmem:[%s9 + $0x8] sm:$0xf]
  %v2777 = vld [vmem:[%s9 + $0xc] sm:$0xf]
  %v2778 = vld [vmem:[%s9 + $0x10] sm:$0xf]
  %v2779 = vld [vmem:[%s9 + $0x14] sm:$0xf]
  %v2780 = vld [vmem:[%s9 + $0x18] sm:$0xf]
  %v2781 = vld [vmem:[%s9 + $0x1c] sm:$0xf]
  %v2782 = vld [vmem:[%s9 + $0x20] sm:$0xf]
  %v2783 = vld [vmem:[%s9 + $0x24] sm:$0xf]
  %v2784 = vld [vmem:[%s9 + $0x28] sm:$0xf]
  %v2785 = vld [vmem:[%s9 + $0x2c] sm:$0xf]
  %v2786 = vld [vmem:[%s9 + $0x30] sm:$0xf]
  %v2787 = vld [vmem:[%s9 + $0x34] sm:$0xf]
  %v2788 = vld [vmem:[%s9 + $0x38] sm:$0xf]
  %v2789 = vld [vmem:[%s9 + $0x3c] sm:$0xf]
  %v2790 = vld [vmem:[%s9 + $0x40] sm:$0xf]
  %v2791 = vld [vmem:[%s9 + $0x44] sm:$0xf]
  %v2792 = vld [vmem:[%s9 + $0x48] sm:$0xf]
  %v2793 = vld [vmem:[%s9 + $0x4c] sm:$0xf]
  %v2794 = vld [vmem:[%s9 + $0x50] sm:$0xf]
  %v2795 = vld [vmem:[%s9 + $0x54] sm:$0xf]
  %v2796 = vld [vmem:[%s9 + $0x58] sm:$0xf]
  %v2797 = vld [vmem:[%s9 + $0x5c] sm:$0xf]
  %v2798 = vld [vmem:[%s9 + $0x60] sm:$0xf]
  %v2799 = vld [vmem:[%s9 + $0x64] sm:$0xf]
  %v2800 = vld [vmem:[%s9 + $0x68] sm:$0xf]
  %v2801 = vld [vmem:[%s9 + $0x6c] sm:$0xf]
  %v2802 = vld [vmem:[%s9 + $0x70] sm:$0xf]
  %v2803 = vld [vmem:[%s9 + $0x74] sm:$0xf]
  %v2804 = vld [vmem:[%s9 + $0x78] sm:$0xf]
  %v2805 = vld [vmem:[%s9 + $0x7c] sm:$0xf]
  %v2806 = vld [vmem:[%s9 + $0x80] sm:$0xf]
  %v2807 = vld [vmem:[%s9 + $0x84] sm:$0xf]
  %v2808 = vld [vmem:[%s9 + $0x88] sm:$0xf]
  %v2809 = vld [vmem:[%s9 + $0x8c] sm:$0xf]
  %v2810 = vld [vmem:[%s9 + $0x90] sm:$0xf]
  %v2811 = vld [vmem:[%s9 + $0x94] sm:$0xf]
  %v2812 = vld [vmem:[%s9 + $0x98] sm:$0xf]
  %v2813 = vld [vmem:[%s9 + $0x9c] sm:$0xf]
  %v2814 = vld [vmem:[%s9 + $0xa0] sm:$0xf]
  %v2815 = vld [vmem:[%s9 + $0xa4] sm:$0xf]
  %v2816 = vld [vmem:[%s9 + $0xa8] sm:$0xf]
  %v2817 = vld [vmem:[%s9 + $0xac] sm:$0xf]
  %v2818 = vld [vmem:[%s9 + $0xb0] sm:$0xf]
  %v2819 = vld [vmem:[%s9 + $0xb4] sm:$0xf]
  %v2820 = vld [vmem:[%s9 + $0xb8] sm:$0xf]
  %v2821 = vld [vmem:[%s9 + $0xbc] sm:$0xf]
  %v2822 = vld [vmem:[%s9 + $0xc0] sm:$0xf]
  %v2823 = vld [vmem:[%s9 + $0xc4] sm:$0xf]
  %v2824 = vld [vmem:[%s9 + $0xc8] sm:$0xf]
  %v2825 = vld [vmem:[%s9 + $0xcc] sm:$0xf]
  %v2826 = vld [vmem:[%s9 + $0xd0] sm:$0xf]
  %v2827 = vld [vmem:[%s9 + $0xd4] sm:$0xf]
  %v2828 = vld [vmem:[%s9 + $0xd8] sm:$0xf]
  %v2829 = vld [vmem:[%s9 + $0xdc] sm:$0xf]
  %v2830 = vld [vmem:[%s9 + $0xe0] sm:$0xf]
  %v2831 = vld [vmem:[%s9 + $0xe4] sm:$0xf]
  %v2832 = vld [vmem:[%s9 + $0xe8] sm:$0xf]
  %v2833 = vld [vmem:[%s9 + $0xec] sm:$0xf]
  %v2834 = vld [vmem:[%s9 + $0xf0] sm:$0xf]
  %v2835 = vld [vmem:[%s9 + $0xf4] sm:$0xf]
  %v2836 = vld [vmem:[%s9 + $0xf8] sm:$0xf]
  %v2837 = vld [vmem:[%s9 + $0xfc] sm:$0xf]
  %v2838 = vld [vmem:[%s10] sm:$0x1]
  %v2840 = vlaneseq
  %v2841 = vshrl.u32 %v2840, 7
  %v2842 = vsub.s32 0, %v2841
  %v2843 = vrot.slane %v2838, %v2842
  %v2909 = vunpack.c.l.b16 %v2774
  %v2910 = vunpack.c.l.b16 %v2775
  %v2911 = vunpack.c.l.b16 %v2776
  %v2912 = vunpack.c.l.b16 %v2777
  %v2913 = vunpack.c.l.b16 %v2778
  %v2914 = vunpack.c.l.b16 %v2779
  %v2915 = vunpack.c.l.b16 %v2780
  %v2916 = vunpack.c.l.b16 %v2781
  %v2917 = vunpack.c.l.b16 %v2782
  %v2918 = vunpack.c.l.b16 %v2783
  %v2919 = vunpack.c.l.b16 %v2784
  %v2920 = vunpack.c.l.b16 %v2785
  %v2921 = vunpack.c.l.b16 %v2786
  %v2922 = vunpack.c.l.b16 %v2787
  %v2923 = vunpack.c.l.b16 %v2788
  %v2924 = vunpack.c.l.b16 %v2789
  %v2925 = vunpack.c.l.b16 %v2790
  %v2926 = vunpack.c.l.b16 %v2791
  %v2927 = vunpack.c.l.b16 %v2792
  %v2928 = vunpack.c.l.b16 %v2793
  %v2929 = vunpack.c.l.b16 %v2794
  %v2930 = vunpack.c.l.b16 %v2795
  %v2931 = vunpack.c.l.b16 %v2796
  %v2932 = vunpack.c.l.b16 %v2797
  %v2933 = vunpack.c.l.b16 %v2798
  %v2934 = vunpack.c.l.b16 %v2799
  %v2935 = vunpack.c.l.b16 %v2800
  %v2936 = vunpack.c.l.b16 %v2801
  %v2937 = vunpack.c.l.b16 %v2802
  %v2938 = vunpack.c.l.b16 %v2803
  %v2939 = vunpack.c.l.b16 %v2804
  %v2940 = vunpack.c.l.b16 %v2805
  %v2941 = vunpack.c.l.b16 %v2806
  %v2942 = vunpack.c.l.b16 %v2807
  %v2943 = vunpack.c.l.b16 %v2808
  %v2944 = vunpack.c.l.b16 %v2809
  %v2945 = vunpack.c.l.b16 %v2810
  %v2946 = vunpack.c.l.b16 %v2811
  %v2947 = vunpack.c.l.b16 %v2812
  %v2948 = vunpack.c.l.b16 %v2813
  %v2949 = vunpack.c.l.b16 %v2814
  %v2950 = vunpack.c.l.b16 %v2815
  %v2951 = vunpack.c.l.b16 %v2816
  %v2952 = vunpack.c.l.b16 %v2817
  %v2953 = vunpack.c.l.b16 %v2818
  %v2954 = vunpack.c.l.b16 %v2819
  %v2955 = vunpack.c.l.b16 %v2820
  %v2956 = vunpack.c.l.b16 %v2821
  %v2957 = vunpack.c.l.b16 %v2822
  %v2958 = vunpack.c.l.b16 %v2823
  %v2959 = vunpack.c.l.b16 %v2824
  %v2960 = vunpack.c.l.b16 %v2825
  %v2961 = vunpack.c.l.b16 %v2826
  %v2962 = vunpack.c.l.b16 %v2827
  %v2963 = vunpack.c.l.b16 %v2828
  %v2964 = vunpack.c.l.b16 %v2829
  %v2965 = vunpack.c.l.b16 %v2830
  %v2966 = vunpack.c.l.b16 %v2831
  %v2967 = vunpack.c.l.b16 %v2832
  %v2968 = vunpack.c.l.b16 %v2833
  %v2969 = vunpack.c.l.b16 %v2834
  %v2970 = vunpack.c.l.b16 %v2835
  %v2971 = vunpack.c.l.b16 %v2836
  %v2972 = vunpack.c.l.b16 %v2837
  %v2973 = vpack.c.b16 %v2910, %v2909
  %v2974 = vpack.c.b16 %v2912, %v2911
  %v2975 = vpack.c.b16 %v2914, %v2913
  %v2976 = vpack.c.b16 %v2916, %v2915
  %v2977 = vpack.c.b16 %v2918, %v2917
  %v2978 = vpack.c.b16 %v2920, %v2919
  %v2979 = vpack.c.b16 %v2922, %v2921
  %v2980 = vpack.c.b16 %v2924, %v2923
  %v2981 = vpack.c.b16 %v2926, %v2925
  %v2982 = vpack.c.b16 %v2928, %v2927
  %v2983 = vpack.c.b16 %v2930, %v2929
  %v2984 = vpack.c.b16 %v2932, %v2931
  %v2985 = vpack.c.b16 %v2934, %v2933
  %v2986 = vpack.c.b16 %v2936, %v2935
  %v2987 = vpack.c.b16 %v2938, %v2937
  %v2988 = vpack.c.b16 %v2940, %v2939
  %v2989 = vpack.c.b16 %v2942, %v2941
  %v2990 = vpack.c.b16 %v2944, %v2943
  %v2991 = vpack.c.b16 %v2946, %v2945
  %v2992 = vpack.c.b16 %v2948, %v2947
  %v2993 = vpack.c.b16 %v2950, %v2949
  %v2994 = vpack.c.b16 %v2952, %v2951
  %v2995 = vpack.c.b16 %v2954, %v2953
  %v2996 = vpack.c.b16 %v2956, %v2955
  %v2997 = vpack.c.b16 %v2958, %v2957
  %v2998 = vpack.c.b16 %v2960, %v2959
  %v2999 = vpack.c.b16 %v2962, %v2961
  %v3000 = vpack.c.b16 %v2964, %v2963
  %v3001 = vpack.c.b16 %v2966, %v2965
  %v3002 = vpack.c.b16 %v2968, %v2967
  %v3003 = vpack.c.b16 %v2970, %v2969
  %v3004 = vpack.c.b16 %v2972, %v2971
  %3037 = vmatprep.subr.bf16.mxu0 0
  %3038 = vmatpush1.bf16.msra.mxu0 %v2980
  %3039 = vmatprep.subr.bf16.mxu0 0
  %3040 = vmatpush1.bf16.msra.mxu0 %v2979
  %3041 = vmatprep.subr.bf16.mxu0 0
  %3042 = vmatpush1.bf16.msra.mxu0 %v2978
  %3043 = vmatprep.subr.bf16.mxu0 0
  %3044 = vmatpush1.bf16.msra.mxu0 %v2977
  %3045 = vmatprep.subr.bf16.mxu0 0
  %3046 = vmatpush1.bf16.msra.mxu0 %v2976
  %3047 = vmatprep.subr.bf16.mxu0 0
  %3048 = vmatpush1.bf16.msra.mxu0 %v2975
  %3049 = vmatprep.subr.bf16.mxu0 0
  %3050 = vmatpush1.bf16.msra.mxu0 %v2974
  %3051 = vmatprep.subr.bf16.mxu0 0
  %3052 = vmatpush1.bf16.msra.mxu0 %v2973
  %3053 = vmatprep.subr.bf16.mxu0 0
  %3054 = vmatpush2.bf16.msra.mxu0 %v2988
  %3055 = vmatprep.subr.bf16.mxu0 0
  %3056 = vmatpush2.bf16.msra.mxu0 %v2987
  %3057 = vmatprep.subr.bf16.mxu0 0
  %3058 = vmatpush2.bf16.msra.mxu0 %v2986
  %3059 = vmatprep.subr.bf16.mxu0 0
  %3060 = vmatpush2.bf16.msra.mxu0 %v2985
  %3061 = vmatprep.subr.bf16.mxu0 0
  %3062 = vmatpush2.bf16.msra.mxu0 %v2984
  %3063 = vmatprep.subr.bf16.mxu0 0
  %3064 = vmatpush2.bf16.msra.mxu0 %v2983
  %3065 = vmatprep.subr.bf16.mxu0 0
  %3066 = vmatpush2.bf16.msra.mxu0 %v2982
  %3067 = vmatprep.subr.bf16.mxu0 0
  %3068 = vmatpush2.bf16.msra.mxu0 %v2981
  %3069 = vmatprep.mubr.bf16.mxu0 %v2771
  %3070 = vmatmul.mubr.bf16.gmra.mxu0 %v2770
  %v3071 = vpop.f32.mrf.mxu0
  %v3072 = vadd.f32 %v2843, %v3071
  %v3073 = vpop.f32.mrf.mxu0
  %v3074 = vpop.f32.mrf.mxu0
  %v3075 = vpop.f32.mrf.mxu0
  %3076 = vdwg.mxu0
  %3077 = vmatprep.subr.bf16.mxu0 0
  %3078 = vmatpush1.bf16.msra.mxu0 %v2996
  %3079 = vmatprep.subr.bf16.mxu0 0
  %3080 = vmatpush1.bf16.msra.mxu0 %v2995
  %3081 = vmatprep.subr.bf16.mxu0 0
  %3082 = vmatpush1.bf16.msra.mxu0 %v2994
  %3083 = vmatprep.subr.bf16.mxu0 0
  %3084 = vmatpush1.bf16.msra.mxu0 %v2993
  %3085 = vmatprep.subr.bf16.mxu0 0
  %3086 = vmatpush1.bf16.msra.mxu0 %v2992
  %3087 = vmatprep.subr.bf16.mxu0 0
  %3088 = vmatpush1.bf16.msra.mxu0 %v2991
  %3089 = vmatprep.subr.bf16.mxu0 0
  %3090 = vmatpush1.bf16.msra.mxu0 %v2990
  %3091 = vmatprep.subr.bf16.mxu0 0
  %3092 = vmatpush1.bf16.msra.mxu0 %v2989
  %3093 = vmatprep.subr.bf16.mxu0 0
  %3094 = vmatpush2.bf16.msra.mxu0 %v3004
  %3095 = vmatprep.subr.bf16.mxu0 0
  %3096 = vmatpush2.bf16.msra.mxu0 %v3003
  %3097 = vmatprep.subr.bf16.mxu0 0
  %3098 = vmatpush2.bf16.msra.mxu0 %v3002
  %3099 = vmatprep.subr.bf16.mxu0 0
  %3100 = vmatpush2.bf16.msra.mxu0 %v3001
  %3101 = vmatprep.subr.bf16.mxu0 0
  %3102 = vmatpush2.bf16.msra.mxu0 %v3000
  %3103 = vmatprep.subr.bf16.mxu0 0
  %3104 = vmatpush2.bf16.msra.mxu0 %v2999
  %3105 = vmatprep.subr.bf16.mxu0 0
  %3106 = vmatpush2.bf16.msra.mxu0 %v2998
  %3107 = vmatprep.subr.bf16.mxu0 0
  %3108 = vmatpush2.bf16.msra.mxu0 %v2997
  %3109 = vmatprep.mubr.bf16.mxu0 %v2773
  %3110 = vmatmul.mubr.bf16.gmra.mxu0 %v2772
  %v3111 = vpop.f32.mrf.mxu0
  %v3112 = vadd.f32 %v3072, %v3111
  %v3113 = vpop.f32.mrf.mxu0
  %v3114 = vpop.f32.mrf.mxu0
  %v3115 = vpop.f32.mrf.mxu0
  %3116 = vdwg.mxu0
  %3117 = vst [vmem:[%s11] sm:$0xff] %v3112
  // Predicated region
  $region46: #{cnn_forward.1} parent=0 // pred_check
    _
  $region47: #{cnn_forward.1} parent=0 // pred_check_branch
    %3119 = sbr.rel (0) target = $region49
  $region48: #{cnn_forward.1} parent=0 // pred_region
    _
  $region49: #{cnn_forward.1} parent=0 // pred_fallthru
    _
  // Predicated region
  $region50: #{cnn_forward.1} parent=0 // pred_check
    _
  $region51: #{cnn_forward.1} parent=0 // pred_check_branch
    %3121 = sbr.rel (0) target = $region53
  $region52: #{cnn_forward.1} parent=0 // pred_region
    _
  $region53: #{cnn_forward.1} parent=0 // pred_fallthru
    _

</llo_original>
